<compile_context>
chip_gen: v7x
topology: tpu7x:2x2x1
jax: 0.10.0
libtpu: 0.0.40
codegen_flags: <defaults>
</compile_context>

<pallas_src>
import functools

import jax
import jax.numpy as jnp
from jax import lax
from jax.experimental import pallas as pl
from jax.experimental.pallas import tpu as pltpu

LANE = 128   # TPU lane width
SUB = 8      # TPU sublane width


def dialogue_kernel(x_ref, wih_ref, whh_ref, b_ref, whead_ref, bhead_ref, out_ref):
    """One batch block of the dialogue model.

    x_ref    : (S, Bt, Hin)        time-major [CLS] features for this batch block
    wih_ref  : (Hin, 4*Hp)         gate-padded input weights  (lanes g*Hp : g*Hp+H)
    whh_ref  : (Hp, 4*Hp)          gate-padded recurrent weights (rows H:Hp are 0)
    b_ref    : (1, 4*Hp)           gate-padded combined bias (b_ih + b_hh)
    whead_ref: (Hp, C=128)         [w_emo.T | w_act.T | 0] padded head weights
    bhead_ref: (1, C=128)          [b_emo   | b_act   | 0] padded head bias
    out_ref  : (S, Bt, C=128)      softmax(logits) over axis 0 (sentence axis)
    """
    S, Bt, Hin = x_ref.shape
    Hp = whh_ref.shape[0]          # padded hidden size (multiple of 128)

    # ---- Hoisted weight loads (once, outside the recurrence). ----
    wih = wih_ref[...]
    whh = whh_ref[...]
    bias = b_ref[...]
    whead = whead_ref[...]
    bhead = bhead_ref[...]

    # ---- Input projection for all timesteps in ONE matmul. ----
    x_flat = x_ref[...].reshape(S * Bt, Hin)                       # (S*Bt, Hin)
    xw = jnp.dot(x_flat, wih, preferred_element_type=jnp.float32) + bias  # (S*Bt, 4*Hp)

    # ---- Statically unrolled LSTM recurrence (S is small & static). ----
    h = jnp.zeros((Bt, Hp), jnp.float32)
    c = jnp.zeros((Bt, Hp), jnp.float32)
    hs = []
    for t in range(S):
        gates = xw[t * Bt:(t + 1) * Bt, :] + jnp.dot(
            h, whh, preferred_element_type=jnp.float32)            # (Bt, 4*Hp)
        # Each gate occupies a full 128-lane-aligned block -> no cross-lane shuffles.
        i_g = jax.nn.sigmoid(gates[:, 0 * Hp:1 * Hp])
        f_g = jax.nn.sigmoid(gates[:, 1 * Hp:2 * Hp])
        g_g = jnp.tanh(gates[:, 2 * Hp:3 * Hp])
        o_g = jax.nn.sigmoid(gates[:, 3 * Hp:4 * Hp])
        c = f_g * c + i_g * g_g
        h = o_g * jnp.tanh(c)
        hs.append(jnp.maximum(h, 0.0))                              # ReLU (dropout p=0)

    # ---- Fused classification heads: one matmul for all timesteps. ----
    h_all = jnp.concatenate(hs, axis=0)                             # (S*Bt, Hp)
    logits = jnp.dot(h_all, whead,
                     preferred_element_type=jnp.float32) + bhead    # (S*Bt, C)
    logits = logits.reshape(S, Bt, logits.shape[-1])                # (S, Bt, C)

    # ---- Softmax over the sentence axis (axis 0 here == PyTorch dim=1). ----
    m = jnp.max(logits, axis=0, keepdims=True)
    e = jnp.exp(logits - m)
    out_ref[...] = e / jnp.sum(e, axis=0, keepdims=True)


@jax.jit
def dialogue_emotion_forward(cls_feats, params):
    """cls_feats: (B, S, H_in) float32 -- the [CLS] embeddings per sentence."""
    B, S, Hin = cls_feats.shape
    H = params["w_hh"].shape[1]                 # PyTorch weight_hh_l0: (4H, H)
    E = params["w_emo"].shape[0]
    A = params["w_act"].shape[0]

    Hp = ((H + LANE - 1) // LANE) * LANE        # gate/hidden padded to lane width
    C = LANE                                    # fused head output width (E + A <= 128)
    Bt = SUB                                    # batch tile = sublane width
    Bp = ((B + Bt - 1) // Bt) * Bt              # padded batch

    # --- pad batch to the sublane width and go time-major: (S, Bp, Hin) ---
    x = jnp.zeros((Bp, S, Hin), jnp.float32).at[:B].set(cls_feats.astype(jnp.float32))
    x_tm = jnp.transpose(x, (1, 0, 2))

    # --- gate-padded LSTM weights: each gate gets its own 128-lane-aligned block ---
    b_comb = params["b_ih"] + params["b_hh"]
    w_ih_p = jnp.zeros((Hin, 4 * Hp), jnp.float32)
    w_hh_p = jnp.zeros((Hp, 4 * Hp), jnp.float32)
    b_p = jnp.zeros((1, 4 * Hp), jnp.float32)
    for g in range(4):                          # PyTorch gate order [i, f, g, o]
        w_ih_p = w_ih_p.at[:, g * Hp:g * Hp + H].set(params["w_ih"][g * H:(g + 1) * H, :].T)
        w_hh_p = w_hh_p.at[:H, g * Hp:g * Hp + H].set(params["w_hh"][g * H:(g + 1) * H, :].T)
        b_p = b_p.at[0, g * Hp:g * Hp + H].set(b_comb[g * H:(g + 1) * H])

    # --- fused, lane-dense classification heads: [emo | act | zero pad] in 128 lanes ---
    w_head_p = jnp.zeros((Hp, C), jnp.float32)
    w_head_p = w_head_p.at[:H, 0:E].set(params["w_emo"].T)
    w_head_p = w_head_p.at[:H, E:E + A].set(params["w_act"].T)
    b_head_p = jnp.zeros((1, C), jnp.float32)
    b_head_p = b_head_p.at[0, 0:E].set(params["b_emo"])
    b_head_p = b_head_p.at[0, E:E + A].set(params["b_act"])

    out_tm = pl.pallas_call(
        dialogue_kernel,
        out_shape=jax.ShapeDtypeStruct((S, Bp, C), jnp.float32),
        grid=(Bp // Bt,),
        in_specs=[
            pl.BlockSpec((S, Bt, Hin), lambda b: (0, b, 0)),   # x: tiled on batch
            pl.BlockSpec((Hin, 4 * Hp), lambda b: (0, 0)),     # weights: resident
            pl.BlockSpec((Hp, 4 * Hp), lambda b: (0, 0)),
            pl.BlockSpec((1, 4 * Hp), lambda b: (0, 0)),
            pl.BlockSpec((Hp, C), lambda b: (0, 0)),
            pl.BlockSpec((1, C), lambda b: (0, 0)),
        ],
        out_specs=pl.BlockSpec((S, Bt, C), lambda b: (0, b, 0)),
        compiler_params=pltpu.CompilerParams(
            dimension_semantics=("parallel",)),
    )(x_tm, w_ih_p, w_hh_p, b_p, w_head_p, b_head_p)

    # back to PyTorch batch-first layout; slice off batch / lane padding.
    out = jnp.transpose(out_tm, (1, 0, 2))      # (Bp, S, C)
    emo = out[:B, :, 0:E]
    act = out[:B, :, E:E + A]
    return emo, act


def reference_forward(cls_feats, params):
    """Pure-JAX reference mirroring the PyTorch forward (double=False, 1-layer LSTM)."""
    B, S, Hin = cls_feats.shape
    H = params["w_hh"].shape[1]
    w_ih, w_hh = params["w_ih"], params["w_hh"]
    b = params["b_ih"] + params["b_hh"]

    def cell(carry, x_t):
        h, c = carry
        gates = x_t @ w_ih.T + h @ w_hh.T + b
        i = jax.nn.sigmoid(gates[:, 0:H])
        f = jax.nn.sigmoid(gates[:, H:2 * H])
        g = jnp.tanh(gates[:, 2 * H:3 * H])
        o = jax.nn.sigmoid(gates[:, 3 * H:4 * H])
        c_new = f * c + i * g
        h_new = o * jnp.tanh(c_new)
        return (h_new, c_new), h_new

    x_tm = jnp.transpose(cls_feats, (1, 0, 2))
    (_, _), hs = lax.scan(cell, (jnp.zeros((B, H)), jnp.zeros((B, H))), x_tm)
    out = jnp.maximum(jnp.transpose(hs, (1, 0, 2)), 0.0)       # (B, S, H)
    emo = out @ params["w_emo"].T + params["b_emo"]
    act = out @ params["w_act"].T + params["b_act"]
    return jax.nn.softmax(emo, axis=1), jax.nn.softmax(act, axis=1)


def init_params(key, hin, h, num_emotion, num_act):
    k = 1.0 / jnp.sqrt(h)
    ks = jax.random.split(key, 8)
    u = lambda kk, shape: jax.random.uniform(kk, shape, jnp.float32, -k, k)
    return {
        "w_ih": u(ks[0], (4 * h, hin)),
        "w_hh": u(ks[1], (4 * h, h)),
        "b_ih": u(ks[2], (4 * h,)),
        "b_hh": u(ks[3], (4 * h,)),
        "w_emo": u(ks[4], (num_emotion, h)),
        "b_emo": u(ks[5], (num_emotion,)),
        "w_act": u(ks[6], (num_act, h)),
        "b_act": u(ks[7], (num_act,)),
    }


if __name__ == "__main__":
    B, S = 2, 8               # batch_size, SentenceNum
    H_IN = 32                 # (synthetic) BERT hidden size
    H = 32                    # lstm_hidden_size
    NUM_EMOTION, NUM_ACT = 6, 4

    root = jax.random.PRNGKey(0)
    k_x, k_p = jax.random.split(root)
    cls_feats = jax.random.normal(k_x, (B, S, H_IN), jnp.float32)
    params = init_params(k_p, H_IN, H, NUM_EMOTION, NUM_ACT)

    emo, act = dialogue_emotion_forward(cls_feats, params)
    emo, act = jax.block_until_ready((emo, act))

    emo_ref, act_ref = reference_forward(cls_feats, params)
    assert emo.shape == (B, S, NUM_EMOTION) and act.shape == (B, S, NUM_ACT)
    assert jnp.allclose(emo, emo_ref, atol=1e-5, rtol=1e-5)
    assert jnp.allclose(act, act_ref, atol=1e-5, rtol=1e-5)

    print("KERNEL_OK")
</pallas_src>

<mosaic_0001>
module attributes {stable_mosaic.version = 11 : i64} {
  func.func @dialogue_kernel(%arg0: i32, %arg1: memref<8x8x32xf32, #tpu.memory_space<vmem>>, %arg2: memref<32x512xf32, #tpu.memory_space<vmem>>, %arg3: memref<128x512xf32, #tpu.memory_space<vmem>>, %arg4: memref<1x512xf32, #tpu.memory_space<vmem>>, %arg5: memref<128x128xf32, #tpu.memory_space<vmem>>, %arg6: memref<1x128xf32, #tpu.memory_space<vmem>>, %arg7: memref<8x8x128xf32, #tpu.memory_space<vmem>>) attributes {dimension_semantics = [#tpu.dimension_semantics<parallel>], iteration_bounds = array<i64: 1>, scalar_prefetch = 0 : i64, scratch_operands = 0 : i64, tpu.core_type = #tpu.core_type<tc>, window_params = [{transform_indices = @transform_0, window_bounds = array<i64: 8, 8, 32>}, {pipeline_mode = #tpu.pipeline_mode<synchronous>, transform_indices = @transform_1, window_bounds = array<i64: 32, 512>}, {pipeline_mode = #tpu.pipeline_mode<synchronous>, transform_indices = @transform_2, window_bounds = array<i64: 128, 512>}, {pipeline_mode = #tpu.pipeline_mode<synchronous>, transform_indices = @transform_3, window_bounds = array<i64: 1, 512>}, {pipeline_mode = #tpu.pipeline_mode<synchronous>, transform_indices = @transform_4, window_bounds = array<i64: 128, 128>}, {pipeline_mode = #tpu.pipeline_mode<synchronous>, transform_indices = @transform_5, window_bounds = array<i64: 1, 128>}, {transform_indices = @transform_6, window_bounds = array<i64: 8, 8, 128>}]} {
    %c0 = arith.constant 0 : index
    %c0_0 = arith.constant 0 : index
    %0 = vector.load %arg2[%c0, %c0_0] : memref<32x512xf32, #tpu.memory_space<vmem>>, vector<32x512xf32>
    %c0_1 = arith.constant 0 : index
    %c0_2 = arith.constant 0 : index
    %1 = vector.load %arg3[%c0_1, %c0_2] : memref<128x512xf32, #tpu.memory_space<vmem>>, vector<128x512xf32>
    %c0_3 = arith.constant 0 : index
    %c0_4 = arith.constant 0 : index
    %2 = vector.load %arg4[%c0_3, %c0_4] : memref<1x512xf32, #tpu.memory_space<vmem>>, vector<1x512xf32>
    %c0_5 = arith.constant 0 : index
    %c0_6 = arith.constant 0 : index
    %3 = vector.load %arg5[%c0_5, %c0_6] : memref<128x128xf32, #tpu.memory_space<vmem>>, vector<128x128xf32>
    %c0_7 = arith.constant 0 : index
    %c0_8 = arith.constant 0 : index
    %4 = vector.load %arg6[%c0_7, %c0_8] : memref<1x128xf32, #tpu.memory_space<vmem>>, vector<1x128xf32>
    %c0_9 = arith.constant 0 : index
    %c0_10 = arith.constant 0 : index
    %c0_11 = arith.constant 0 : index
    %5 = vector.load %arg1[%c0_9, %c0_10, %c0_11] : memref<8x8x32xf32, #tpu.memory_space<vmem>>, vector<8x8x32xf32>
    %6 = vector.shape_cast %5 : vector<8x8x32xf32> to vector<64x32xf32>
    %cst = arith.constant dense<0.000000e+00> : vector<64x512xf32>
    %7 = tpu.matmul %6, %0, %cst {dimension_numbers = #tpu.dot_dimension_numbers<[1], [0], [0], [1], [0, 0, 1, 1], [], []>} : vector<64x32xf32>, vector<32x512xf32>, vector<64x512xf32> -> vector<64x512xf32>
    %8 = vector.broadcast %2 : vector<1x512xf32> to vector<64x512xf32>
    %9 = arith.addf %7, %8 : vector<64x512xf32>
    %cst_12 = arith.constant 0.000000e+00 : f32
    %10 = vector.broadcast %cst_12 : f32 to vector<8x128xf32>
    %cst_13 = arith.constant 0.000000e+00 : f32
    %11 = vector.broadcast %cst_13 : f32 to vector<8x128xf32>
    %12 = vector.extract_strided_slice %9 {offsets = [0, 0], sizes = [8, 512], strides = [1, 1]} : vector<64x512xf32> to vector<8x512xf32>
    %cst_14 = arith.constant dense<0.000000e+00> : vector<8x512xf32>
    %13 = tpu.matmul %10, %1, %cst_14 {dimension_numbers = #tpu.dot_dimension_numbers<[1], [0], [0], [1], [0, 0, 1, 1], [], []>} : vector<8x128xf32>, vector<128x512xf32>, vector<8x512xf32> -> vector<8x512xf32>
    %14 = arith.addf %12, %13 : vector<8x512xf32>
    %15 = vector.extract_strided_slice %14 {offsets = [0, 0], sizes = [8, 128], strides = [1, 1]} : vector<8x512xf32> to vector<8x128xf32>
    %16 = arith.negf %15 : vector<8x128xf32>
    %17 = math.exp %16 : vector<8x128xf32>
    %cst_15 = arith.constant 1.000000e+00 : f32
    %18 = vector.broadcast %cst_15 : f32 to vector<8x128xf32>
    %19 = arith.addf %18, %17 : vector<8x128xf32>
    %20 = arith.divf %18, %19 : vector<8x128xf32>
    %21 = vector.extract_strided_slice %14 {offsets = [0, 128], sizes = [8, 128], strides = [1, 1]} : vector<8x512xf32> to vector<8x128xf32>
    %22 = arith.negf %21 : vector<8x128xf32>
    %23 = math.exp %22 : vector<8x128xf32>
    %cst_16 = arith.constant 1.000000e+00 : f32
    %24 = vector.broadcast %cst_16 : f32 to vector<8x128xf32>
    %25 = arith.addf %24, %23 : vector<8x128xf32>
    %26 = arith.divf %24, %25 : vector<8x128xf32>
    %27 = vector.extract_strided_slice %14 {offsets = [0, 256], sizes = [8, 128], strides = [1, 1]} : vector<8x512xf32> to vector<8x128xf32>
    %28 = math.tanh %27 : vector<8x128xf32>
    %29 = vector.extract_strided_slice %14 {offsets = [0, 384], sizes = [8, 128], strides = [1, 1]} : vector<8x512xf32> to vector<8x128xf32>
    %30 = arith.negf %29 : vector<8x128xf32>
    %31 = math.exp %30 : vector<8x128xf32>
    %cst_17 = arith.constant 1.000000e+00 : f32
    %32 = vector.broadcast %cst_17 : f32 to vector<8x128xf32>
    %33 = arith.addf %32, %31 : vector<8x128xf32>
    %34 = arith.divf %32, %33 : vector<8x128xf32>
    %35 = arith.mulf %26, %11 : vector<8x128xf32>
    %36 = arith.mulf %20, %28 : vector<8x128xf32>
    %37 = arith.addf %35, %36 : vector<8x128xf32>
    %38 = math.tanh %37 : vector<8x128xf32>
    %39 = arith.mulf %34, %38 : vector<8x128xf32>
    %cst_18 = arith.constant 0.000000e+00 : f32
    %40 = vector.broadcast %cst_18 : f32 to vector<8x128xf32>
    %41 = arith.maximumf %39, %40 : vector<8x128xf32>
    %42 = vector.extract_strided_slice %9 {offsets = [8, 0], sizes = [8, 512], strides = [1, 1]} : vector<64x512xf32> to vector<8x512xf32>
    %cst_19 = arith.constant dense<0.000000e+00> : vector<8x512xf32>
    %43 = tpu.matmul %39, %1, %cst_19 {dimension_numbers = #tpu.dot_dimension_numbers<[1], [0], [0], [1], [0, 0, 1, 1], [], []>} : vector<8x128xf32>, vector<128x512xf32>, vector<8x512xf32> -> vector<8x512xf32>
    %44 = arith.addf %42, %43 : vector<8x512xf32>
    %45 = vector.extract_strided_slice %44 {offsets = [0, 0], sizes = [8, 128], strides = [1, 1]} : vector<8x512xf32> to vector<8x128xf32>
    %46 = arith.negf %45 : vector<8x128xf32>
    %47 = math.exp %46 : vector<8x128xf32>
    %cst_20 = arith.constant 1.000000e+00 : f32
    %48 = vector.broadcast %cst_20 : f32 to vector<8x128xf32>
    %49 = arith.addf %48, %47 : vector<8x128xf32>
    %50 = arith.divf %48, %49 : vector<8x128xf32>
    %51 = vector.extract_strided_slice %44 {offsets = [0, 128], sizes = [8, 128], strides = [1, 1]} : vector<8x512xf32> to vector<8x128xf32>
    %52 = arith.negf %51 : vector<8x128xf32>
    %53 = math.exp %52 : vector<8x128xf32>
    %cst_21 = arith.constant 1.000000e+00 : f32
    %54 = vector.broadcast %cst_21 : f32 to vector<8x128xf32>
    %55 = arith.addf %54, %53 : vector<8x128xf32>
    %56 = arith.divf %54, %55 : vector<8x128xf32>
    %57 = vector.extract_strided_slice %44 {offsets = [0, 256], sizes = [8, 128], strides = [1, 1]} : vector<8x512xf32> to vector<8x128xf32>
    %58 = math.tanh %57 : vector<8x128xf32>
    %59 = vector.extract_strided_slice %44 {offsets = [0, 384], sizes = [8, 128], strides = [1, 1]} : vector<8x512xf32> to vector<8x128xf32>
    %60 = arith.negf %59 : vector<8x128xf32>
    %61 = math.exp %60 : vector<8x128xf32>
    %cst_22 = arith.constant 1.000000e+00 : f32
    %62 = vector.broadcast %cst_22 : f32 to vector<8x128xf32>
    %63 = arith.addf %62, %61 : vector<8x128xf32>
    %64 = arith.divf %62, %63 : vector<8x128xf32>
    %65 = arith.mulf %56, %37 : vector<8x128xf32>
    %66 = arith.mulf %50, %58 : vector<8x128xf32>
    %67 = arith.addf %65, %66 : vector<8x128xf32>
    %68 = math.tanh %67 : vector<8x128xf32>
    %69 = arith.mulf %64, %68 : vector<8x128xf32>
    %cst_23 = arith.constant 0.000000e+00 : f32
    %70 = vector.broadcast %cst_23 : f32 to vector<8x128xf32>
    %71 = arith.maximumf %69, %70 : vector<8x128xf32>
    %72 = vector.extract_strided_slice %9 {offsets = [16, 0], sizes = [8, 512], strides = [1, 1]} : vector<64x512xf32> to vector<8x512xf32>
    %cst_24 = arith.constant dense<0.000000e+00> : vector<8x512xf32>
    %73 = tpu.matmul %69, %1, %cst_24 {dimension_numbers = #tpu.dot_dimension_numbers<[1], [0], [0], [1], [0, 0, 1, 1], [], []>} : vector<8x128xf32>, vector<128x512xf32>, vector<8x512xf32> -> vector<8x512xf32>
    %74 = arith.addf %72, %73 : vector<8x512xf32>
    %75 = vector.extract_strided_slice %74 {offsets = [0, 0], sizes = [8, 128], strides = [1, 1]} : vector<8x512xf32> to vector<8x128xf32>
    %76 = arith.negf %75 : vector<8x128xf32>
    %77 = math.exp %76 : vector<8x128xf32>
    %cst_25 = arith.constant 1.000000e+00 : f32
    %78 = vector.broadcast %cst_25 : f32 to vector<8x128xf32>
    %79 = arith.addf %78, %77 : vector<8x128xf32>
    %80 = arith.divf %78, %79 : vector<8x128xf32>
    %81 = vector.extract_strided_slice %74 {offsets = [0, 128], sizes = [8, 128], strides = [1, 1]} : vector<8x512xf32> to vector<8x128xf32>
    %82 = arith.negf %81 : vector<8x128xf32>
    %83 = math.exp %82 : vector<8x128xf32>
    %cst_26 = arith.constant 1.000000e+00 : f32
    %84 = vector.broadcast %cst_26 : f32 to vector<8x128xf32>
    %85 = arith.addf %84, %83 : vector<8x128xf32>
    %86 = arith.divf %84, %85 : vector<8x128xf32>
    %87 = vector.extract_strided_slice %74 {offsets = [0, 256], sizes = [8, 128], strides = [1, 1]} : vector<8x512xf32> to vector<8x128xf32>
    %88 = math.tanh %87 : vector<8x128xf32>
    %89 = vector.extract_strided_slice %74 {offsets = [0, 384], sizes = [8, 128], strides = [1, 1]} : vector<8x512xf32> to vector<8x128xf32>
    %90 = arith.negf %89 : vector<8x128xf32>
    %91 = math.exp %90 : vector<8x128xf32>
    %cst_27 = arith.constant 1.000000e+00 : f32
    %92 = vector.broadcast %cst_27 : f32 to vector<8x128xf32>
    %93 = arith.addf %92, %91 : vector<8x128xf32>
    %94 = arith.divf %92, %93 : vector<8x128xf32>
    %95 = arith.mulf %86, %67 : vector<8x128xf32>
    %96 = arith.mulf %80, %88 : vector<8x128xf32>
    %97 = arith.addf %95, %96 : vector<8x128xf32>
    %98 = math.tanh %97 : vector<8x128xf32>
    %99 = arith.mulf %94, %98 : vector<8x128xf32>
    %cst_28 = arith.constant 0.000000e+00 : f32
    %100 = vector.broadcast %cst_28 : f32 to vector<8x128xf32>
    %101 = arith.maximumf %99, %100 : vector<8x128xf32>
    %102 = vector.extract_strided_slice %9 {offsets = [24, 0], sizes = [8, 512], strides = [1, 1]} : vector<64x512xf32> to vector<8x512xf32>
    %cst_29 = arith.constant dense<0.000000e+00> : vector<8x512xf32>
    %103 = tpu.matmul %99, %1, %cst_29 {dimension_numbers = #tpu.dot_dimension_numbers<[1], [0], [0], [1], [0, 0, 1, 1], [], []>} : vector<8x128xf32>, vector<128x512xf32>, vector<8x512xf32> -> vector<8x512xf32>
    %104 = arith.addf %102, %103 : vector<8x512xf32>
    %105 = vector.extract_strided_slice %104 {offsets = [0, 0], sizes = [8, 128], strides = [1, 1]} : vector<8x512xf32> to vector<8x128xf32>
    %106 = arith.negf %105 : vector<8x128xf32>
    %107 = math.exp %106 : vector<8x128xf32>
    %cst_30 = arith.constant 1.000000e+00 : f32
    %108 = vector.broadcast %cst_30 : f32 to vector<8x128xf32>
    %109 = arith.addf %108, %107 : vector<8x128xf32>
    %110 = arith.divf %108, %109 : vector<8x128xf32>
    %111 = vector.extract_strided_slice %104 {offsets = [0, 128], sizes = [8, 128], strides = [1, 1]} : vector<8x512xf32> to vector<8x128xf32>
    %112 = arith.negf %111 : vector<8x128xf32>
    %113 = math.exp %112 : vector<8x128xf32>
    %cst_31 = arith.constant 1.000000e+00 : f32
    %114 = vector.broadcast %cst_31 : f32 to vector<8x128xf32>
    %115 = arith.addf %114, %113 : vector<8x128xf32>
    %116 = arith.divf %114, %115 : vector<8x128xf32>
    %117 = vector.extract_strided_slice %104 {offsets = [0, 256], sizes = [8, 128], strides = [1, 1]} : vector<8x512xf32> to vector<8x128xf32>
    %118 = math.tanh %117 : vector<8x128xf32>
    %119 = vector.extract_strided_slice %104 {offsets = [0, 384], sizes = [8, 128], strides = [1, 1]} : vector<8x512xf32> to vector<8x128xf32>
    %120 = arith.negf %119 : vector<8x128xf32>
    %121 = math.exp %120 : vector<8x128xf32>
    %cst_32 = arith.constant 1.000000e+00 : f32
    %122 = vector.broadcast %cst_32 : f32 to vector<8x128xf32>
    %123 = arith.addf %122, %121 : vector<8x128xf32>
    %124 = arith.divf %122, %123 : vector<8x128xf32>
    %125 = arith.mulf %116, %97 : vector<8x128xf32>
    %126 = arith.mulf %110, %118 : vector<8x128xf32>
    %127 = arith.addf %125, %126 : vector<8x128xf32>
    %128 = math.tanh %127 : vector<8x128xf32>
    %129 = arith.mulf %124, %128 : vector<8x128xf32>
    %cst_33 = arith.constant 0.000000e+00 : f32
    %130 = vector.broadcast %cst_33 : f32 to vector<8x128xf32>
    %131 = arith.maximumf %129, %130 : vector<8x128xf32>
    %132 = vector.extract_strided_slice %9 {offsets = [32, 0], sizes = [8, 512], strides = [1, 1]} : vector<64x512xf32> to vector<8x512xf32>
    %cst_34 = arith.constant dense<0.000000e+00> : vector<8x512xf32>
    %133 = tpu.matmul %129, %1, %cst_34 {dimension_numbers = #tpu.dot_dimension_numbers<[1], [0], [0], [1], [0, 0, 1, 1], [], []>} : vector<8x128xf32>, vector<128x512xf32>, vector<8x512xf32> -> vector<8x512xf32>
    %134 = arith.addf %132, %133 : vector<8x512xf32>
    %135 = vector.extract_strided_slice %134 {offsets = [0, 0], sizes = [8, 128], strides = [1, 1]} : vector<8x512xf32> to vector<8x128xf32>
    %136 = arith.negf %135 : vector<8x128xf32>
    %137 = math.exp %136 : vector<8x128xf32>
    %cst_35 = arith.constant 1.000000e+00 : f32
    %138 = vector.broadcast %cst_35 : f32 to vector<8x128xf32>
    %139 = arith.addf %138, %137 : vector<8x128xf32>
    %140 = arith.divf %138, %139 : vector<8x128xf32>
    %141 = vector.extract_strided_slice %134 {offsets = [0, 128], sizes = [8, 128], strides = [1, 1]} : vector<8x512xf32> to vector<8x128xf32>
    %142 = arith.negf %141 : vector<8x128xf32>
    %143 = math.exp %142 : vector<8x128xf32>
    %cst_36 = arith.constant 1.000000e+00 : f32
    %144 = vector.broadcast %cst_36 : f32 to vector<8x128xf32>
    %145 = arith.addf %144, %143 : vector<8x128xf32>
    %146 = arith.divf %144, %145 : vector<8x128xf32>
    %147 = vector.extract_strided_slice %134 {offsets = [0, 256], sizes = [8, 128], strides = [1, 1]} : vector<8x512xf32> to vector<8x128xf32>
    %148 = math.tanh %147 : vector<8x128xf32>
    %149 = vector.extract_strided_slice %134 {offsets = [0, 384], sizes = [8, 128], strides = [1, 1]} : vector<8x512xf32> to vector<8x128xf32>
    %150 = arith.negf %149 : vector<8x128xf32>
    %151 = math.exp %150 : vector<8x128xf32>
    %cst_37 = arith.constant 1.000000e+00 : f32
    %152 = vector.broadcast %cst_37 : f32 to vector<8x128xf32>
    %153 = arith.addf %152, %151 : vector<8x128xf32>
    %154 = arith.divf %152, %153 : vector<8x128xf32>
    %155 = arith.mulf %146, %127 : vector<8x128xf32>
    %156 = arith.mulf %140, %148 : vector<8x128xf32>
    %157 = arith.addf %155, %156 : vector<8x128xf32>
    %158 = math.tanh %157 : vector<8x128xf32>
    %159 = arith.mulf %154, %158 : vector<8x128xf32>
    %cst_38 = arith.constant 0.000000e+00 : f32
    %160 = vector.broadcast %cst_38 : f32 to vector<8x128xf32>
    %161 = arith.maximumf %159, %160 : vector<8x128xf32>
    %162 = vector.extract_strided_slice %9 {offsets = [40, 0], sizes = [8, 512], strides = [1, 1]} : vector<64x512xf32> to vector<8x512xf32>
    %cst_39 = arith.constant dense<0.000000e+00> : vector<8x512xf32>
    %163 = tpu.matmul %159, %1, %cst_39 {dimension_numbers = #tpu.dot_dimension_numbers<[1], [0], [0], [1], [0, 0, 1, 1], [], []>} : vector<8x128xf32>, vector<128x512xf32>, vector<8x512xf32> -> vector<8x512xf32>
    %164 = arith.addf %162, %163 : vector<8x512xf32>
    %165 = vector.extract_strided_slice %164 {offsets = [0, 0], sizes = [8, 128], strides = [1, 1]} : vector<8x512xf32> to vector<8x128xf32>
    %166 = arith.negf %165 : vector<8x128xf32>
    %167 = math.exp %166 : vector<8x128xf32>
    %cst_40 = arith.constant 1.000000e+00 : f32
    %168 = vector.broadcast %cst_40 : f32 to vector<8x128xf32>
    %169 = arith.addf %168, %167 : vector<8x128xf32>
    %170 = arith.divf %168, %169 : vector<8x128xf32>
    %171 = vector.extract_strided_slice %164 {offsets = [0, 128], sizes = [8, 128], strides = [1, 1]} : vector<8x512xf32> to vector<8x128xf32>
    %172 = arith.negf %171 : vector<8x128xf32>
    %173 = math.exp %172 : vector<8x128xf32>
    %cst_41 = arith.constant 1.000000e+00 : f32
    %174 = vector.broadcast %cst_41 : f32 to vector<8x128xf32>
    %175 = arith.addf %174, %173 : vector<8x128xf32>
    %176 = arith.divf %174, %175 : vector<8x128xf32>
    %177 = vector.extract_strided_slice %164 {offsets = [0, 256], sizes = [8, 128], strides = [1, 1]} : vector<8x512xf32> to vector<8x128xf32>
    %178 = math.tanh %177 : vector<8x128xf32>
    %179 = vector.extract_strided_slice %164 {offsets = [0, 384], sizes = [8, 128], strides = [1, 1]} : vector<8x512xf32> to vector<8x128xf32>
    %180 = arith.negf %179 : vector<8x128xf32>
    %181 = math.exp %180 : vector<8x128xf32>
    %cst_42 = arith.constant 1.000000e+00 : f32
    %182 = vector.broadcast %cst_42 : f32 to vector<8x128xf32>
    %183 = arith.addf %182, %181 : vector<8x128xf32>
    %184 = arith.divf %182, %183 : vector<8x128xf32>
    %185 = arith.mulf %176, %157 : vector<8x128xf32>
    %186 = arith.mulf %170, %178 : vector<8x128xf32>
    %187 = arith.addf %185, %186 : vector<8x128xf32>
    %188 = math.tanh %187 : vector<8x128xf32>
    %189 = arith.mulf %184, %188 : vector<8x128xf32>
    %cst_43 = arith.constant 0.000000e+00 : f32
    %190 = vector.broadcast %cst_43 : f32 to vector<8x128xf32>
    %191 = arith.maximumf %189, %190 : vector<8x128xf32>
    %192 = vector.extract_strided_slice %9 {offsets = [48, 0], sizes = [8, 512], strides = [1, 1]} : vector<64x512xf32> to vector<8x512xf32>
    %cst_44 = arith.constant dense<0.000000e+00> : vector<8x512xf32>
    %193 = tpu.matmul %189, %1, %cst_44 {dimension_numbers = #tpu.dot_dimension_numbers<[1], [0], [0], [1], [0, 0, 1, 1], [], []>} : vector<8x128xf32>, vector<128x512xf32>, vector<8x512xf32> -> vector<8x512xf32>
    %194 = arith.addf %192, %193 : vector<8x512xf32>
    %195 = vector.extract_strided_slice %194 {offsets = [0, 0], sizes = [8, 128], strides = [1, 1]} : vector<8x512xf32> to vector<8x128xf32>
    %196 = arith.negf %195 : vector<8x128xf32>
    %197 = math.exp %196 : vector<8x128xf32>
    %cst_45 = arith.constant 1.000000e+00 : f32
    %198 = vector.broadcast %cst_45 : f32 to vector<8x128xf32>
    %199 = arith.addf %198, %197 : vector<8x128xf32>
    %200 = arith.divf %198, %199 : vector<8x128xf32>
    %201 = vector.extract_strided_slice %194 {offsets = [0, 128], sizes = [8, 128], strides = [1, 1]} : vector<8x512xf32> to vector<8x128xf32>
    %202 = arith.negf %201 : vector<8x128xf32>
    %203 = math.exp %202 : vector<8x128xf32>
    %cst_46 = arith.constant 1.000000e+00 : f32
    %204 = vector.broadcast %cst_46 : f32 to vector<8x128xf32>
    %205 = arith.addf %204, %203 : vector<8x128xf32>
    %206 = arith.divf %204, %205 : vector<8x128xf32>
    %207 = vector.extract_strided_slice %194 {offsets = [0, 256], sizes = [8, 128], strides = [1, 1]} : vector<8x512xf32> to vector<8x128xf32>
    %208 = math.tanh %207 : vector<8x128xf32>
    %209 = vector.extract_strided_slice %194 {offsets = [0, 384], sizes = [8, 128], strides = [1, 1]} : vector<8x512xf32> to vector<8x128xf32>
    %210 = arith.negf %209 : vector<8x128xf32>
    %211 = math.exp %210 : vector<8x128xf32>
    %cst_47 = arith.constant 1.000000e+00 : f32
    %212 = vector.broadcast %cst_47 : f32 to vector<8x128xf32>
    %213 = arith.addf %212, %211 : vector<8x128xf32>
    %214 = arith.divf %212, %213 : vector<8x128xf32>
    %215 = arith.mulf %206, %187 : vector<8x128xf32>
    %216 = arith.mulf %200, %208 : vector<8x128xf32>
    %217 = arith.addf %215, %216 : vector<8x128xf32>
    %218 = math.tanh %217 : vector<8x128xf32>
    %219 = arith.mulf %214, %218 : vector<8x128xf32>
    %cst_48 = arith.constant 0.000000e+00 : f32
    %220 = vector.broadcast %cst_48 : f32 to vector<8x128xf32>
    %221 = arith.maximumf %219, %220 : vector<8x128xf32>
    %222 = vector.extract_strided_slice %9 {offsets = [56, 0], sizes = [8, 512], strides = [1, 1]} : vector<64x512xf32> to vector<8x512xf32>
    %cst_49 = arith.constant dense<0.000000e+00> : vector<8x512xf32>
    %223 = tpu.matmul %219, %1, %cst_49 {dimension_numbers = #tpu.dot_dimension_numbers<[1], [0], [0], [1], [0, 0, 1, 1], [], []>} : vector<8x128xf32>, vector<128x512xf32>, vector<8x512xf32> -> vector<8x512xf32>
    %224 = arith.addf %222, %223 : vector<8x512xf32>
    %225 = vector.extract_strided_slice %224 {offsets = [0, 0], sizes = [8, 128], strides = [1, 1]} : vector<8x512xf32> to vector<8x128xf32>
    %226 = arith.negf %225 : vector<8x128xf32>
    %227 = math.exp %226 : vector<8x128xf32>
    %cst_50 = arith.constant 1.000000e+00 : f32
    %228 = vector.broadcast %cst_50 : f32 to vector<8x128xf32>
    %229 = arith.addf %228, %227 : vector<8x128xf32>
    %230 = arith.divf %228, %229 : vector<8x128xf32>
    %231 = vector.extract_strided_slice %224 {offsets = [0, 128], sizes = [8, 128], strides = [1, 1]} : vector<8x512xf32> to vector<8x128xf32>
    %232 = arith.negf %231 : vector<8x128xf32>
    %233 = math.exp %232 : vector<8x128xf32>
    %cst_51 = arith.constant 1.000000e+00 : f32
    %234 = vector.broadcast %cst_51 : f32 to vector<8x128xf32>
    %235 = arith.addf %234, %233 : vector<8x128xf32>
    %236 = arith.divf %234, %235 : vector<8x128xf32>
    %237 = vector.extract_strided_slice %224 {offsets = [0, 256], sizes = [8, 128], strides = [1, 1]} : vector<8x512xf32> to vector<8x128xf32>
    %238 = math.tanh %237 : vector<8x128xf32>
    %239 = vector.extract_strided_slice %224 {offsets = [0, 384], sizes = [8, 128], strides = [1, 1]} : vector<8x512xf32> to vector<8x128xf32>
    %240 = arith.negf %239 : vector<8x128xf32>
    %241 = math.exp %240 : vector<8x128xf32>
    %cst_52 = arith.constant 1.000000e+00 : f32
    %242 = vector.broadcast %cst_52 : f32 to vector<8x128xf32>
    %243 = arith.addf %242, %241 : vector<8x128xf32>
    %244 = arith.divf %242, %243 : vector<8x128xf32>
    %245 = arith.mulf %236, %217 : vector<8x128xf32>
    %246 = arith.mulf %230, %238 : vector<8x128xf32>
    %247 = arith.addf %245, %246 : vector<8x128xf32>
    %248 = math.tanh %247 : vector<8x128xf32>
    %249 = arith.mulf %244, %248 : vector<8x128xf32>
    %cst_53 = arith.constant 0.000000e+00 : f32
    %250 = vector.broadcast %cst_53 : f32 to vector<8x128xf32>
    %251 = arith.maximumf %249, %250 : vector<8x128xf32>
    %252 = tpu.concatenate %41, %71, %101, %131, %161, %191, %221, %251 in 0 : vector<8x128xf32>, vector<8x128xf32>, vector<8x128xf32>, vector<8x128xf32>, vector<8x128xf32>, vector<8x128xf32>, vector<8x128xf32>, vector<8x128xf32> -> vector<64x128xf32>
    %cst_54 = arith.constant dense<0.000000e+00> : vector<64x128xf32>
    %253 = tpu.matmul %252, %3, %cst_54 {dimension_numbers = #tpu.dot_dimension_numbers<[1], [0], [0], [1], [0, 0, 1, 1], [], []>} : vector<64x128xf32>, vector<128x128xf32>, vector<64x128xf32> -> vector<64x128xf32>
    %254 = vector.broadcast %4 : vector<1x128xf32> to vector<64x128xf32>
    %255 = arith.addf %253, %254 : vector<64x128xf32>
    %256 = vector.shape_cast %255 : vector<64x128xf32> to vector<8x8x128xf32>
    %cst_55 = arith.constant dense<0xFF800000> : vector<8x128xf32>
    %257 = vector.multi_reduction <maximumf>, %256, %cst_55 [0] : vector<8x8x128xf32> to vector<8x128xf32>
    %258 = vector.shape_cast %257 : vector<8x128xf32> to vector<1x8x128xf32>
    %259 = vector.broadcast %258 : vector<1x8x128xf32> to vector<8x8x128xf32>
    %260 = arith.subf %256, %259 : vector<8x8x128xf32>
    %261 = math.exp %260 : vector<8x8x128xf32>
    %cst_56 = arith.constant dense<0.000000e+00> : vector<8x128xf32>
    %262 = vector.multi_reduction <add>, %261, %cst_56 [0] : vector<8x8x128xf32> to vector<8x128xf32>
    %263 = vector.shape_cast %262 : vector<8x128xf32> to vector<1x8x128xf32>
    %264 = vector.broadcast %263 : vector<1x8x128xf32> to vector<8x8x128xf32>
    %265 = arith.divf %261, %264 : vector<8x8x128xf32>
    %c0_57 = arith.constant 0 : index
    %c0_58 = arith.constant 0 : index
    %c0_59 = arith.constant 0 : index
    %266 = vector.load %arg7[%c0_57, %c0_58, %c0_59] : memref<8x8x128xf32, #tpu.memory_space<vmem>>, vector<8x8x128xf32>
    tpu.vector_store %arg7[%c0_57, %c0_58, %c0_59], %265 {strides = array<i32>} : memref<8x8x128xf32, #tpu.memory_space<vmem>>, vector<8x8x128xf32>,
    return
  }
  func.func @transform_0(%arg0: i32) -> (i32, i32, i32) {
    %c0_i32 = arith.constant 0 : i32
    %c0_i32_0 = arith.constant 0 : i32
    %c0_i32_1 = arith.constant 0 : i32
    return %c0_i32, %arg0, %c0_i32_0 : i32, i32, i32
  }
  func.func @transform_1(%arg0: i32) -> (i32, i32) {
    %c0_i32 = arith.constant 0 : i32
    %c0_i32_0 = arith.constant 0 : i32
    %c0_i32_1 = arith.constant 0 : i32
    return %c0_i32, %c0_i32_0 : i32, i32
  }
  func.func @transform_2(%arg0: i32) -> (i32, i32) {
    %c0_i32 = arith.constant 0 : i32
    %c0_i32_0 = arith.constant 0 : i32
    %c0_i32_1 = arith.constant 0 : i32
    return %c0_i32, %c0_i32_0 : i32, i32
  }
  func.func @transform_3(%arg0: i32) -> (i32, i32) {
    %c0_i32 = arith.constant 0 : i32
    %c0_i32_0 = arith.constant 0 : i32
    %c0_i32_1 = arith.constant 0 : i32
    return %c0_i32, %c0_i32_0 : i32, i32
  }
  func.func @transform_4(%arg0: i32) -> (i32, i32) {
    %c0_i32 = arith.constant 0 : i32
    %c0_i32_0 = arith.constant 0 : i32
    %c0_i32_1 = arith.constant 0 : i32
    return %c0_i32, %c0_i32_0 : i32, i32
  }
  func.func @transform_5(%arg0: i32) -> (i32, i32) {
    %c0_i32 = arith.constant 0 : i32
    %c0_i32_0 = arith.constant 0 : i32
    %c0_i32_1 = arith.constant 0 : i32
    return %c0_i32, %c0_i32_0 : i32, i32
  }
  func.func @transform_6(%arg0: i32) -> (i32, i32, i32) {
    %c0_i32 = arith.constant 0 : i32
    %c0_i32_0 = arith.constant 0 : i32
    %c0_i32_1 = arith.constant 0 : i32
    return %c0_i32, %arg0, %c0_i32_0 : i32, i32, i32
  }
}

</mosaic_0001>

<llo_original>
// kernel: dialogue_emotion_forward.1
$region0: #{dialogue_emotion_forward.1}
  #allocation0 [shape = 'u32[]', space=smem, size = 0x4, offset = 0x4, fixed_abs, tag = 'smem constant byte address 0x4 - core index']
  #allocation1 [shape = 'u32[144,128]{1,0:T(1,128)}', space=vmem, size = 0x12000, scoped, tag = 'internal scratch']
  %s0 = inlined_call_operand.vmem [shape: f32[8,8,32], index: 0, kind: input, shape index: {}]
  %s1 = inlined_call_operand.vmem [shape: f32[32,512], index: 1, kind: input, shape index: {}]
  %s2 = inlined_call_operand.vmem [shape: f32[128,512], index: 2, kind: input, shape index: {}]
  %s3 = inlined_call_operand.vmem [shape: f32[1,512], index: 3, kind: input, shape index: {}]
  %s4 = inlined_call_operand.vmem [shape: f32[128,128], index: 4, kind: input, shape index: {}]
  %s5 = inlined_call_operand.vmem [shape: f32[1,128], index: 5, kind: input, shape index: {}]
  %s6 = inlined_call_operand.vmem [shape: f32[8,8,128], index: 6, kind: output, shape index: {}]
  %s7 = sld [smem:[#allocation0]]
  $region34: #{dialogue_emotion_forward.1} parent=0
    _
  %s9 = ssub.s32 1, %s7
  %s10 = scalar_select 0, %s9, %s7
  // Predicated region
  $region2: #{dialogue_emotion_forward.1} parent=0 // pred_check
    _
  $region3: #{dialogue_emotion_forward.1} parent=0 // pred_check_branch
    %12 = sbr.rel (0) target = $region5
  $region4: #{dialogue_emotion_forward.1} parent=0 // pred_region
    _
  $region5: #{dialogue_emotion_forward.1} parent=0 // pred_fallthru
    _
  // Predicated region
  $region6: #{dialogue_emotion_forward.1} parent=0 // pred_check
    _
  $region7: #{dialogue_emotion_forward.1} parent=0 // pred_check_branch
    %14 = sbr.rel (0) target = $region9
  $region8: #{dialogue_emotion_forward.1} parent=0 // pred_region
    _
  $region9: #{dialogue_emotion_forward.1} parent=0 // pred_fallthru
    _
  // Predicated region
  $region10: #{dialogue_emotion_forward.1} parent=0 // pred_check
    _
  $region11: #{dialogue_emotion_forward.1} parent=0 // pred_check_branch
    %16 = sbr.rel (0) target = $region13
  $region12: #{dialogue_emotion_forward.1} parent=0 // pred_region
    _
  $region13: #{dialogue_emotion_forward.1} parent=0 // pred_fallthru
    _
  // Predicated region
  $region14: #{dialogue_emotion_forward.1} parent=0 // pred_check
    _
  $region15: #{dialogue_emotion_forward.1} parent=0 // pred_check_branch
    %18 = sbr.rel (0) target = $region17
  $region16: #{dialogue_emotion_forward.1} parent=0 // pred_region
    _
  $region17: #{dialogue_emotion_forward.1} parent=0 // pred_fallthru
    _
  // Predicated region
  $region18: #{dialogue_emotion_forward.1} parent=0 // pred_check
    _
  $region19: #{dialogue_emotion_forward.1} parent=0 // pred_check_branch
    %20 = sbr.rel (0) target = $region21
  $region20: #{dialogue_emotion_forward.1} parent=0 // pred_region
    _
  $region21: #{dialogue_emotion_forward.1} parent=0 // pred_fallthru
    _
  // Predicated region
  $region22: #{dialogue_emotion_forward.1} parent=0 // pred_check
    _
  $region23: #{dialogue_emotion_forward.1} parent=0 // pred_check_branch
    %22 = sbr.rel (0) target = $region25
  $region24: #{dialogue_emotion_forward.1} parent=0 // pred_region
    _
  $region25: #{dialogue_emotion_forward.1} parent=0 // pred_fallthru
    _
  %v23 = vld [vmem:[%s1] sm:$0xff]
  %v24 = vld [vmem:[%s1 + $0x8] sm:$0xff]
  %v25 = vld [vmem:[%s1 + $0x10] sm:$0xff]
  %v26 = vld [vmem:[%s1 + $0x18] sm:$0xff]
  %v27 = vld [vmem:[%s1 + $0x20] sm:$0xff]
  %v28 = vld [vmem:[%s1 + $0x28] sm:$0xff]
  %v29 = vld [vmem:[%s1 + $0x30] sm:$0xff]
  %v30 = vld [vmem:[%s1 + $0x38] sm:$0xff]
  %v31 = vld [vmem:[%s1 + $0x40] sm:$0xff]
  %v32 = vld [vmem:[%s1 + $0x48] sm:$0xff]
  %v33 = vld [vmem:[%s1 + $0x50] sm:$0xff]
  %v34 = vld [vmem:[%s1 + $0x58] sm:$0xff]
  %v35 = vld [vmem:[%s1 + $0x60] sm:$0xff]
  %v36 = vld [vmem:[%s1 + $0x68] sm:$0xff]
  %v37 = vld [vmem:[%s1 + $0x70] sm:$0xff]
  %v38 = vld [vmem:[%s1 + $0x78] sm:$0xff]
  %v39 = vld [vmem:[%s2] sm:$0xff]
  %v40 = vld [vmem:[%s2 + $0x8] sm:$0xff]
  %v41 = vld [vmem:[%s2 + $0x10] sm:$0xff]
  %v42 = vld [vmem:[%s2 + $0x18] sm:$0xff]
  %v43 = vld [vmem:[%s2 + $0x20] sm:$0xff]
  %v44 = vld [vmem:[%s2 + $0x28] sm:$0xff]
  %v45 = vld [vmem:[%s2 + $0x30] sm:$0xff]
  %v46 = vld [vmem:[%s2 + $0x38] sm:$0xff]
  %v47 = vld [vmem:[%s2 + $0x40] sm:$0xff]
  %v48 = vld [vmem:[%s2 + $0x48] sm:$0xff]
  %v49 = vld [vmem:[%s2 + $0x50] sm:$0xff]
  %v50 = vld [vmem:[%s2 + $0x58] sm:$0xff]
  %v51 = vld [vmem:[%s2 + $0x60] sm:$0xff]
  %v52 = vld [vmem:[%s2 + $0x68] sm:$0xff]
  %v53 = vld [vmem:[%s2 + $0x70] sm:$0xff]
  %v54 = vld [vmem:[%s2 + $0x78] sm:$0xff]
  %v55 = vld [vmem:[%s2 + $0x80] sm:$0xff]
  %v56 = vld [vmem:[%s2 + $0x88] sm:$0xff]
  %v57 = vld [vmem:[%s2 + $0x90] sm:$0xff]
  %v58 = vld [vmem:[%s2 + $0x98] sm:$0xff]
  %v59 = vld [vmem:[%s2 + $0xa0] sm:$0xff]
  %v60 = vld [vmem:[%s2 + $0xa8] sm:$0xff]
  %v61 = vld [vmem:[%s2 + $0xb0] sm:$0xff]
  %v62 = vld [vmem:[%s2 + $0xb8] sm:$0xff]
  %v63 = vld [vmem:[%s2 + $0xc0] sm:$0xff]
  %v64 = vld [vmem:[%s2 + $0xc8] sm:$0xff]
  %v65 = vld [vmem:[%s2 + $0xd0] sm:$0xff]
  %v66 = vld [vmem:[%s2 + $0xd8] sm:$0xff]
  %v67 = vld [vmem:[%s2 + $0xe0] sm:$0xff]
  %v68 = vld [vmem:[%s2 + $0xe8] sm:$0xff]
  %v69 = vld [vmem:[%s2 + $0xf0] sm:$0xff]
  %v70 = vld [vmem:[%s2 + $0xf8] sm:$0xff]
  %v71 = vld [vmem:[%s2 + $0x100] sm:$0xff]
  %v72 = vld [vmem:[%s2 + $0x108] sm:$0xff]
  %v73 = vld [vmem:[%s2 + $0x110] sm:$0xff]
  %v74 = vld [vmem:[%s2 + $0x118] sm:$0xff]
  %v75 = vld [vmem:[%s2 + $0x120] sm:$0xff]
  %v76 = vld [vmem:[%s2 + $0x128] sm:$0xff]
  %v77 = vld [vmem:[%s2 + $0x130] sm:$0xff]
  %v78 = vld [vmem:[%s2 + $0x138] sm:$0xff]
  %v79 = vld [vmem:[%s2 + $0x140] sm:$0xff]
  %v80 = vld [vmem:[%s2 + $0x148] sm:$0xff]
  %v81 = vld [vmem:[%s2 + $0x150] sm:$0xff]
  %v82 = vld [vmem:[%s2 + $0x158] sm:$0xff]
  %v83 = vld [vmem:[%s2 + $0x160] sm:$0xff]
  %v84 = vld [vmem:[%s2 + $0x168] sm:$0xff]
  %v85 = vld [vmem:[%s2 + $0x170] sm:$0xff]
  %v86 = vld [vmem:[%s2 + $0x178] sm:$0xff]
  %v87 = vld [vmem:[%s2 + $0x180] sm:$0xff]
  %v88 = vld [vmem:[%s2 + $0x188] sm:$0xff]
  %v89 = vld [vmem:[%s2 + $0x190] sm:$0xff]
  %v90 = vld [vmem:[%s2 + $0x198] sm:$0xff]
  %v91 = vld [vmem:[%s2 + $0x1a0] sm:$0xff]
  %v92 = vld [vmem:[%s2 + $0x1a8] sm:$0xff]
  %v93 = vld [vmem:[%s2 + $0x1b0] sm:$0xff]
  %v94 = vld [vmem:[%s2 + $0x1b8] sm:$0xff]
  %v95 = vld [vmem:[%s2 + $0x1c0] sm:$0xff]
  %v96 = vld [vmem:[%s2 + $0x1c8] sm:$0xff]
  %v97 = vld [vmem:[%s2 + $0x1d0] sm:$0xff]
  %v98 = vld [vmem:[%s2 + $0x1d8] sm:$0xff]
  %v99 = vld [vmem:[%s2 + $0x1e0] sm:$0xff]
  %v100 = vld [vmem:[%s2 + $0x1e8] sm:$0xff]
  %v101 = vld [vmem:[%s2 + $0x1f0] sm:$0xff]
  %v102 = vld [vmem:[%s2 + $0x1f8] sm:$0xff]
  %v103 = vld [vmem:[%s3] sm:$0xf]
  %v104 = vld [vmem:[%s4] sm:$0xff]
  %v105 = vld [vmem:[%s4 + $0x8] sm:$0xff]
  %v106 = vld [vmem:[%s4 + $0x10] sm:$0xff]
  %v107 = vld [vmem:[%s4 + $0x18] sm:$0xff]
  %v108 = vld [vmem:[%s4 + $0x20] sm:$0xff]
  %v109 = vld [vmem:[%s4 + $0x28] sm:$0xff]
  %v110 = vld [vmem:[%s4 + $0x30] sm:$0xff]
  %v111 = vld [vmem:[%s4 + $0x38] sm:$0xff]
  %v112 = vld [vmem:[%s4 + $0x40] sm:$0xff]
  %v113 = vld [vmem:[%s4 + $0x48] sm:$0xff]
  %v114 = vld [vmem:[%s4 + $0x50] sm:$0xff]
  %v115 = vld [vmem:[%s4 + $0x58] sm:$0xff]
  %v116 = vld [vmem:[%s4 + $0x60] sm:$0xff]
  %v117 = vld [vmem:[%s4 + $0x68] sm:$0xff]
  %v118 = vld [vmem:[%s4 + $0x70] sm:$0xff]
  %v119 = vld [vmem:[%s4 + $0x78] sm:$0xff]
  %v120 = vld [vmem:[%s5] sm:$0x1]
  %v121 = vld [vmem:[%s0] sm:$0xff]
  %v122 = vld [vmem:[%s0 + $0x8] sm:$0xff]
  %v123 = vld [vmem:[%s0 + $0x10] sm:$0xff]
  %v124 = vld [vmem:[%s0 + $0x18] sm:$0xff]
  %v125 = vld [vmem:[%s0 + $0x20] sm:$0xff]
  %v126 = vld [vmem:[%s0 + $0x28] sm:$0xff]
  %v127 = vld [vmem:[%s0 + $0x30] sm:$0xff]
  %v128 = vld [vmem:[%s0 + $0x38] sm:$0xff]
  %v130 = vlaneseq
  %v131 = vshrl.u32 %v130, 7
  %v132 = vsub.s32 0, %v131
  %v133 = vrot.slane %v103, %v132
  %v134 = vlaneseq
  %v135 = vshrl.u32 %v134, 7
  %v136 = vsub.s32 1, %v135
  %v137 = vrot.slane %v103, %v136
  %v138 = vlaneseq
  %v139 = vshrl.u32 %v138, 7
  %v140 = vsub.s32 2, %v139
  %v141 = vrot.slane %v103, %v140
  %v142 = vlaneseq
  %v143 = vshrl.u32 %v142, 7
  %v144 = vsub.s32 3, %v143
  %v145 = vrot.slane %v103, %v144
  %vm150 = vcmask 261120
  %v152 = vsel %vm150, %v121, 0
  %v155 = vsel %vm150, %v122, 0
  %v158 = vsel %vm150, %v123, 0
  %v161 = vsel %vm150, %v124, 0
  %v164 = vsel %vm150, %v125, 0
  %v167 = vsel %vm150, %v126, 0
  %v170 = vsel %vm150, %v127, 0
  %v173 = vsel %vm150, %v128, 0
  %175 = vmatprep.subr.mxu0 %v24
  %176 = vmatpush1.msra.mxu0 %v23
  %177 = vmatprep.subr.mxu0 %v28
  %178 = vmatpush1.msra.mxu0 %v27
  %179 = vmatprep.subr.mxu0 %v32
  %180 = vmatpush1.msra.mxu0 %v31
  %181 = vmatprep.subr.mxu0 %v36
  %182 = vmatpush1.msra.mxu0 %v35
  %183 = vmatprep.subr.mxu0 0.0
  %184 = vmatpush1.msra.mxu0 0.0
  %185 = vmatprep.subr.mxu0 0.0
  %186 = vmatpush1.msra.mxu0 0.0
  %187 = vmatprep.subr.mxu0 0.0
  %188 = vmatpush1.msra.mxu0 0.0
  %189 = vmatprep.subr.mxu0 0.0
  %190 = vmatpush1.msra.mxu0 0.0
  %191 = vmatprep.subr.mxu0 0.0
  %192 = vmatpush1.msra.mxu0 0.0
  %193 = vmatprep.subr.mxu0 0.0
  %194 = vmatpush1.msra.mxu0 0.0
  %195 = vmatprep.subr.mxu0 0.0
  %196 = vmatpush1.msra.mxu0 0.0
  %197 = vmatprep.subr.mxu0 0.0
  %198 = vmatpush1.msra.mxu0 0.0
  %199 = vmatprep.subr.mxu0 0.0
  %200 = vmatpush1.msra.mxu0 0.0
  %201 = vmatprep.subr.mxu0 0.0
  %202 = vmatpush1.msra.mxu0 0.0
  %203 = vmatprep.subr.mxu0 0.0
  %204 = vmatpush1.msra.mxu0 0.0
  %205 = vmatprep.subr.mxu0 0.0
  %206 = vmatpush1.msra.mxu0 0.0
  %207 = vmatprep.subr.mxu0 0.0
  %208 = vmatpush1.msra.mxu0 0.0
  %209 = vmatprep.subr.mxu0 0.0
  %210 = vmatpush1.msra.mxu0 0.0
  %211 = vmatprep.subr.mxu0 0.0
  %212 = vmatpush1.msra.mxu0 0.0
  %213 = vmatprep.subr.mxu0 0.0
  %214 = vmatpush1.msra.mxu0 0.0
  %215 = vmatprep.subr.mxu0 0.0
  %216 = vmatpush1.msra.mxu0 0.0
  %217 = vmatprep.subr.mxu0 0.0
  %218 = vmatpush1.msra.mxu0 0.0
  %219 = vmatprep.subr.mxu0 0.0
  %220 = vmatpush1.msra.mxu0 0.0
  %221 = vmatprep.subr.mxu0 0.0
  %222 = vmatpush1.msra.mxu0 0.0
  %223 = vmatprep.subr.mxu0 0.0
  %224 = vmatpush1.msra.mxu0 0.0
  %225 = vmatprep.subr.mxu0 0.0
  %226 = vmatpush1.msra.mxu0 0.0
  %227 = vmatprep.subr.mxu0 0.0
  %228 = vmatpush1.msra.mxu0 0.0
  %229 = vmatprep.subr.mxu0 0.0
  %230 = vmatpush1.msra.mxu0 0.0
  %231 = vmatprep.subr.mxu0 0.0
  %232 = vmatpush1.msra.mxu0 0.0
  %233 = vmatprep.subr.mxu0 0.0
  %234 = vmatpush1.msra.mxu0 0.0
  %235 = vmatprep.subr.mxu0 0.0
  %236 = vmatpush1.msra.mxu0 0.0
  %237 = vmatprep.subr.mxu0 0.0
  %238 = vmatpush1.msra.mxu0 0.0
  %239 = vmatprep.mubr.f32.mxu0 0.0
  %240 = vmatmul.mubr.f32.gmra.mrb[0].mxu0 %v152
  %v241 = vpop.f32.mrb[0].mxu0
  %v242 = vadd.f32 %v133, %v241
  %v243 = vpop.f32.mrb[0].mxu0
  %v244 = vadd.f32 %v137, %v243
  %245 = vmatprep.mubr.f32.mxu0 0.0
  %246 = vmatmul.mubr.f32.gmra.mrb[0].mxu0 %v155
  %v247 = vpop.f32.mrb[0].mxu0
  %v248 = vadd.f32 %v133, %v247
  %v249 = vpop.f32.mrb[0].mxu0
  %v250 = vadd.f32 %v137, %v249
  %251 = vmatprep.mubr.f32.mxu0 0.0
  %252 = vmatmul.mubr.f32.gmra.mrb[0].mxu0 %v158
  %v253 = vpop.f32.mrb[0].mxu0
  %v254 = vadd.f32 %v133, %v253
  %v255 = vpop.f32.mrb[0].mxu0
  %v256 = vadd.f32 %v137, %v255
  %257 = vmatprep.mubr.f32.mxu0 0.0
  %258 = vmatmul.mubr.f32.gmra.mrb[0].mxu0 %v161
  %v259 = vpop.f32.mrb[0].mxu0
  %v260 = vadd.f32 %v133, %v259
  %v261 = vpop.f32.mrb[0].mxu0
  %v262 = vadd.f32 %v137, %v261
  %263 = vmatprep.mubr.f32.mxu0 0.0
  %264 = vmatmul.mubr.f32.gmra.mrb[0].mxu0 %v164
  %v265 = vpop.f32.mrb[0].mxu0
  %v266 = vadd.f32 %v133, %v265
  %v267 = vpop.f32.mrb[0].mxu0
  %v268 = vadd.f32 %v137, %v267
  %269 = vmatprep.mubr.f32.mxu0 0.0
  %270 = vmatmul.mubr.f32.gmra.mrb[0].mxu0 %v167
  %v271 = vpop.f32.mrb[0].mxu0
  %v272 = vadd.f32 %v133, %v271
  %v273 = vpop.f32.mrb[0].mxu0
  %v274 = vadd.f32 %v137, %v273
  %275 = vmatprep.mubr.f32.mxu0 0.0
  %276 = vmatmul.mubr.f32.gmra.mrb[0].mxu0 %v170
  %v277 = vpop.f32.mrb[0].mxu0
  %v278 = vadd.f32 %v133, %v277
  %v279 = vpop.f32.mrb[0].mxu0
  %v280 = vadd.f32 %v137, %v279
  %281 = vmatprep.mubr.f32.mxu0 0.0
  %282 = vmatmul.mubr.f32.gmra.mrb[0].mxu0 %v173
  %v283 = vpop.f32.mrb[0].mxu0
  %v284 = vadd.f32 %v133, %v283
  %v285 = vpop.f32.mrb[0].mxu0
  %v286 = vadd.f32 %v137, %v285
  %287 = vdwg.mxu0
  %288 = vmatprep.subr.mxu0 %v26
  %289 = vmatpush1.msra.mxu0 %v25
  %290 = vmatprep.subr.mxu0 %v30
  %291 = vmatpush1.msra.mxu0 %v29
  %292 = vmatprep.subr.mxu0 %v34
  %293 = vmatpush1.msra.mxu0 %v33
  %294 = vmatprep.subr.mxu0 %v38
  %295 = vmatpush1.msra.mxu0 %v37
  %296 = vmatprep.subr.mxu0 0.0
  %297 = vmatpush1.msra.mxu0 0.0
  %298 = vmatprep.subr.mxu0 0.0
  %299 = vmatpush1.msra.mxu0 0.0
  %300 = vmatprep.subr.mxu0 0.0
  %301 = vmatpush1.msra.mxu0 0.0
  %302 = vmatprep.subr.mxu0 0.0
  %303 = vmatpush1.msra.mxu0 0.0
  %304 = vmatprep.subr.mxu0 0.0
  %305 = vmatpush1.msra.mxu0 0.0
  %306 = vmatprep.subr.mxu0 0.0
  %307 = vmatpush1.msra.mxu0 0.0
  %308 = vmatprep.subr.mxu0 0.0
  %309 = vmatpush1.msra.mxu0 0.0
  %310 = vmatprep.subr.mxu0 0.0
  %311 = vmatpush1.msra.mxu0 0.0
  %312 = vmatprep.subr.mxu0 0.0
  %313 = vmatpush1.msra.mxu0 0.0
  %314 = vmatprep.subr.mxu0 0.0
  %315 = vmatpush1.msra.mxu0 0.0
  %316 = vmatprep.subr.mxu0 0.0
  %317 = vmatpush1.msra.mxu0 0.0
  %318 = vmatprep.subr.mxu0 0.0
  %319 = vmatpush1.msra.mxu0 0.0
  %320 = vmatprep.subr.mxu0 0.0
  %321 = vmatpush1.msra.mxu0 0.0
  %322 = vmatprep.subr.mxu0 0.0
  %323 = vmatpush1.msra.mxu0 0.0
  %324 = vmatprep.subr.mxu0 0.0
  %325 = vmatpush1.msra.mxu0 0.0
  %326 = vmatprep.subr.mxu0 0.0
  %327 = vmatpush1.msra.mxu0 0.0
  %328 = vmatprep.subr.mxu0 0.0
  %329 = vmatpush1.msra.mxu0 0.0
  %330 = vmatprep.subr.mxu0 0.0
  %331 = vmatpush1.msra.mxu0 0.0
  %332 = vmatprep.subr.mxu0 0.0
  %333 = vmatpush1.msra.mxu0 0.0
  %334 = vmatprep.subr.mxu0 0.0
  %335 = vmatpush1.msra.mxu0 0.0
  %336 = vmatprep.subr.mxu0 0.0
  %337 = vmatpush1.msra.mxu0 0.0
  %338 = vmatprep.subr.mxu0 0.0
  %339 = vmatpush1.msra.mxu0 0.0
  %340 = vmatprep.subr.mxu0 0.0
  %341 = vmatpush1.msra.mxu0 0.0
  %342 = vmatprep.subr.mxu0 0.0
  %343 = vmatpush1.msra.mxu0 0.0
  %344 = vmatprep.subr.mxu0 0.0
  %345 = vmatpush1.msra.mxu0 0.0
  %346 = vmatprep.subr.mxu0 0.0
  %347 = vmatpush1.msra.mxu0 0.0
  %348 = vmatprep.subr.mxu0 0.0
  %349 = vmatpush1.msra.mxu0 0.0
  %350 = vmatprep.subr.mxu0 0.0
  %351 = vmatpush1.msra.mxu0 0.0
  %352 = vmatprep.mubr.f32.mxu0 0.0
  %353 = vmatmul.mubr.f32.gmra.mrb[0].mxu0 %v152
  %v354 = vpop.f32.mrb[0].mxu0
  %v355 = vadd.f32 %v141, %v354
  %v356 = vpop.f32.mrb[0].mxu0
  %v357 = vadd.f32 %v145, %v356
  %358 = vmatprep.mubr.f32.mxu0 0.0
  %359 = vmatmul.mubr.f32.gmra.mrb[0].mxu0 %v155
  %v360 = vpop.f32.mrb[0].mxu0
  %v361 = vadd.f32 %v141, %v360
  %v362 = vpop.f32.mrb[0].mxu0
  %v363 = vadd.f32 %v145, %v362
  %364 = vmatprep.mubr.f32.mxu0 0.0
  %365 = vmatmul.mubr.f32.gmra.mrb[0].mxu0 %v158
  %v366 = vpop.f32.mrb[0].mxu0
  %v367 = vadd.f32 %v141, %v366
  %v368 = vpop.f32.mrb[0].mxu0
  %v369 = vadd.f32 %v145, %v368
  %370 = vmatprep.mubr.f32.mxu0 0.0
  %371 = vmatmul.mubr.f32.gmra.mrb[0].mxu0 %v161
  %v372 = vpop.f32.mrb[0].mxu0
  %v373 = vadd.f32 %v141, %v372
  %v374 = vpop.f32.mrb[0].mxu0
  %v375 = vadd.f32 %v145, %v374
  %376 = vmatprep.mubr.f32.mxu0 0.0
  %377 = vmatmul.mubr.f32.gmra.mrb[0].mxu0 %v164
  %v378 = vpop.f32.mrb[0].mxu0
  %v379 = vadd.f32 %v141, %v378
  %v380 = vpop.f32.mrb[0].mxu0
  %v381 = vadd.f32 %v145, %v380
  %382 = vmatprep.mubr.f32.mxu0 0.0
  %383 = vmatmul.mubr.f32.gmra.mrb[0].mxu0 %v167
  %v384 = vpop.f32.mrb[0].mxu0
  %v385 = vadd.f32 %v141, %v384
  %v386 = vpop.f32.mrb[0].mxu0
  %v387 = vadd.f32 %v145, %v386
  %388 = vmatprep.mubr.f32.mxu0 0.0
  %389 = vmatmul.mubr.f32.gmra.mrb[0].mxu0 %v170
  %v390 = vpop.f32.mrb[0].mxu0
  %v391 = vadd.f32 %v141, %v390
  %v392 = vpop.f32.mrb[0].mxu0
  %v393 = vadd.f32 %v145, %v392
  %394 = vmatprep.mubr.f32.mxu0 0.0
  %395 = vmatmul.mubr.f32.gmra.mrb[0].mxu0 %v173
  %v396 = vpop.f32.mrb[0].mxu0
  %v397 = vadd.f32 %v141, %v396
  %v398 = vpop.f32.mrb[0].mxu0
  %v399 = vadd.f32 %v145, %v398
  %400 = vdwg.mxu0
  %401 = vmatprep.subr.mxu0 %v40
  %402 = vmatpush1.msra.mxu0 %v39
  %403 = vmatprep.subr.mxu0 %v44
  %404 = vmatpush1.msra.mxu0 %v43
  %405 = vmatprep.subr.mxu0 %v48
  %406 = vmatpush1.msra.mxu0 %v47
  %407 = vmatprep.subr.mxu0 %v52
  %408 = vmatpush1.msra.mxu0 %v51
  %409 = vmatprep.subr.mxu0 %v56
  %410 = vmatpush1.msra.mxu0 %v55
  %411 = vmatprep.subr.mxu0 %v60
  %412 = vmatpush1.msra.mxu0 %v59
  %413 = vmatprep.subr.mxu0 %v64
  %414 = vmatpush1.msra.mxu0 %v63
  %415 = vmatprep.subr.mxu0 %v68
  %416 = vmatpush1.msra.mxu0 %v67
  %417 = vmatprep.subr.mxu0 %v72
  %418 = vmatpush1.msra.mxu0 %v71
  %419 = vmatprep.subr.mxu0 %v76
  %420 = vmatpush1.msra.mxu0 %v75
  %421 = vmatprep.subr.mxu0 %v80
  %422 = vmatpush1.msra.mxu0 %v79
  %423 = vmatprep.subr.mxu0 %v84
  %424 = vmatpush1.msra.mxu0 %v83
  %425 = vmatprep.subr.mxu0 %v88
  %426 = vmatpush1.msra.mxu0 %v87
  %427 = vmatprep.subr.mxu0 %v92
  %428 = vmatpush1.msra.mxu0 %v91
  %429 = vmatprep.subr.mxu0 %v96
  %430 = vmatpush1.msra.mxu0 %v95
  %431 = vmatprep.subr.mxu0 %v100
  %432 = vmatpush1.msra.mxu0 %v99
  %433 = vmatprep.subr.mxu0 0.0
  %434 = vmatpush1.msra.mxu0 0.0
  %435 = vmatprep.subr.mxu0 0.0
  %436 = vmatpush1.msra.mxu0 0.0
  %437 = vmatprep.subr.mxu0 0.0
  %438 = vmatpush1.msra.mxu0 0.0
  %439 = vmatprep.subr.mxu0 0.0
  %440 = vmatpush1.msra.mxu0 0.0
  %441 = vmatprep.subr.mxu0 0.0
  %442 = vmatpush1.msra.mxu0 0.0
  %443 = vmatprep.subr.mxu0 0.0
  %444 = vmatpush1.msra.mxu0 0.0
  %445 = vmatprep.subr.mxu0 0.0
  %446 = vmatpush1.msra.mxu0 0.0
  %447 = vmatprep.subr.mxu0 0.0
  %448 = vmatpush1.msra.mxu0 0.0
  %449 = vmatprep.subr.mxu0 0.0
  %450 = vmatpush1.msra.mxu0 0.0
  %451 = vmatprep.subr.mxu0 0.0
  %452 = vmatpush1.msra.mxu0 0.0
  %453 = vmatprep.subr.mxu0 0.0
  %454 = vmatpush1.msra.mxu0 0.0
  %455 = vmatprep.subr.mxu0 0.0
  %456 = vmatpush1.msra.mxu0 0.0
  %457 = vmatprep.subr.mxu0 0.0
  %458 = vmatpush1.msra.mxu0 0.0
  %459 = vmatprep.subr.mxu0 0.0
  %460 = vmatpush1.msra.mxu0 0.0
  %461 = vmatprep.subr.mxu0 0.0
  %462 = vmatpush1.msra.mxu0 0.0
  %463 = vmatprep.subr.mxu0 0.0
  %464 = vmatpush1.msra.mxu0 0.0
  %465 = vmatprep.mubr.f32.mxu0 0.0
  %466 = vmatmul.mubr.f32.gmra.mrb[0].mxu0 0.0
  %v467 = vpop.f32.mrb[0].mxu0
  %v468 = vadd.f32 0.0, %v467
  %v469 = vpop.f32.mrb[0].mxu0
  %v470 = vadd.f32 0.0, %v469
  %471 = vdwg.mxu0
  %472 = vmatprep.subr.mxu0 %v42
  %473 = vmatpush1.msra.mxu0 %v41
  %474 = vmatprep.subr.mxu0 %v46
  %475 = vmatpush1.msra.mxu0 %v45
  %476 = vmatprep.subr.mxu0 %v50
  %477 = vmatpush1.msra.mxu0 %v49
  %478 = vmatprep.subr.mxu0 %v54
  %479 = vmatpush1.msra.mxu0 %v53
  %480 = vmatprep.subr.mxu0 %v58
  %481 = vmatpush1.msra.mxu0 %v57
  %482 = vmatprep.subr.mxu0 %v62
  %483 = vmatpush1.msra.mxu0 %v61
  %484 = vmatprep.subr.mxu0 %v66
  %485 = vmatpush1.msra.mxu0 %v65
  %486 = vmatprep.subr.mxu0 %v70
  %487 = vmatpush1.msra.mxu0 %v69
  %488 = vmatprep.subr.mxu0 %v74
  %489 = vmatpush1.msra.mxu0 %v73
  %490 = vmatprep.subr.mxu0 %v78
  %491 = vmatpush1.msra.mxu0 %v77
  %492 = vmatprep.subr.mxu0 %v82
  %493 = vmatpush1.msra.mxu0 %v81
  %494 = vmatprep.subr.mxu0 %v86
  %495 = vmatpush1.msra.mxu0 %v85
  %496 = vmatprep.subr.mxu0 %v90
  %497 = vmatpush1.msra.mxu0 %v89
  %498 = vmatprep.subr.mxu0 %v94
  %499 = vmatpush1.msra.mxu0 %v93
  %500 = vmatprep.subr.mxu0 %v98
  %501 = vmatpush1.msra.mxu0 %v97
  %502 = vmatprep.subr.mxu0 %v102
  %503 = vmatpush1.msra.mxu0 %v101
  %504 = vmatprep.subr.mxu0 0.0
  %505 = vmatpush1.msra.mxu0 0.0
  %506 = vmatprep.subr.mxu0 0.0
  %507 = vmatpush1.msra.mxu0 0.0
  %508 = vmatprep.subr.mxu0 0.0
  %509 = vmatpush1.msra.mxu0 0.0
  %510 = vmatprep.subr.mxu0 0.0
  %511 = vmatpush1.msra.mxu0 0.0
  %512 = vmatprep.subr.mxu0 0.0
  %513 = vmatpush1.msra.mxu0 0.0
  %514 = vmatprep.subr.mxu0 0.0
  %515 = vmatpush1.msra.mxu0 0.0
  %516 = vmatprep.subr.mxu0 0.0
  %517 = vmatpush1.msra.mxu0 0.0
  %518 = vmatprep.subr.mxu0 0.0
  %519 = vmatpush1.msra.mxu0 0.0
  %520 = vmatprep.subr.mxu0 0.0
  %521 = vmatpush1.msra.mxu0 0.0
  %522 = vmatprep.subr.mxu0 0.0
  %523 = vmatpush1.msra.mxu0 0.0
  %524 = vmatprep.subr.mxu0 0.0
  %525 = vmatpush1.msra.mxu0 0.0
  %526 = vmatprep.subr.mxu0 0.0
  %527 = vmatpush1.msra.mxu0 0.0
  %528 = vmatprep.subr.mxu0 0.0
  %529 = vmatpush1.msra.mxu0 0.0
  %530 = vmatprep.subr.mxu0 0.0
  %531 = vmatpush1.msra.mxu0 0.0
  %532 = vmatprep.subr.mxu0 0.0
  %533 = vmatpush1.msra.mxu0 0.0
  %534 = vmatprep.subr.mxu0 0.0
  %535 = vmatpush1.msra.mxu0 0.0
  %536 = vmatprep.mubr.f32.mxu0 0.0
  %537 = vmatmul.mubr.f32.gmra.mrb[0].mxu0 0.0
  %v538 = vpop.f32.mrb[0].mxu0
  %v539 = vadd.f32 0.0, %v538
  %v540 = vpop.f32.mrb[0].mxu0
  %v541 = vadd.f32 0.0, %v540
  %542 = vdwg.mxu0
  %v543 = vadd.f32 %v242, %v468
  %v544 = vadd.f32 %v244, %v470
  %v545 = vadd.f32 %v355, %v539
  %v546 = vadd.f32 %v357, %v541
  %v547 = vxor.u32 %v543, 2147483648
  %v548 = vmul.f32 %v547, 1.442695
  %v549 = vpow.pop %v548
  %v550 = vadd.f32 %v549, 1.0
  %v551 = vrcp.pop %v550
  %v552 = vmul.f32 1.0, %v551
  %v553 = vxor.u32 %v544, 2147483648
  %v554 = vmul.f32 %v553, 1.442695
  %v555 = vpow.pop %v554
  %v556 = vadd.f32 %v555, 1.0
  %v557 = vrcp.pop %v556
  %v558 = vmul.f32 1.0, %v557
  %v559 = vtanh.pop %v545
  %v560 = vxor.u32 %v546, 2147483648
  %v561 = vmul.f32 %v560, 1.442695
  %v562 = vpow.pop %v561
  %v563 = vadd.f32 %v562, 1.0
  %v564 = vrcp.pop %v563
  %v565 = vmul.f32 1.0, %v564
  %v566 = vmul.f32 %v558, 0.0
  %v567 = vmul.f32 %v552, %v559
  %v568 = vadd.f32 %v566, %v567
  %v569 = vtanh.pop %v568
  %v570 = vmul.f32 %v565, %v569
  %v571 = vmax.f32 %v570, 0.0
  %572 = vmatprep.subr.mxu0 %v40
  %573 = vmatpush1.msra.mxu0 %v39
  %574 = vmatprep.subr.mxu0 %v44
  %575 = vmatpush1.msra.mxu0 %v43
  %576 = vmatprep.subr.mxu0 %v48
  %577 = vmatpush1.msra.mxu0 %v47
  %578 = vmatprep.subr.mxu0 %v52
  %579 = vmatpush1.msra.mxu0 %v51
  %580 = vmatprep.subr.mxu0 %v56
  %581 = vmatpush1.msra.mxu0 %v55
  %582 = vmatprep.subr.mxu0 %v60
  %583 = vmatpush1.msra.mxu0 %v59
  %584 = vmatprep.subr.mxu0 %v64
  %585 = vmatpush1.msra.mxu0 %v63
  %586 = vmatprep.subr.mxu0 %v68
  %587 = vmatpush1.msra.mxu0 %v67
  %588 = vmatprep.subr.mxu0 %v72
  %589 = vmatpush1.msra.mxu0 %v71
  %590 = vmatprep.subr.mxu0 %v76
  %591 = vmatpush1.msra.mxu0 %v75
  %592 = vmatprep.subr.mxu0 %v80
  %593 = vmatpush1.msra.mxu0 %v79
  %594 = vmatprep.subr.mxu0 %v84
  %595 = vmatpush1.msra.mxu0 %v83
  %596 = vmatprep.subr.mxu0 %v88
  %597 = vmatpush1.msra.mxu0 %v87
  %598 = vmatprep.subr.mxu0 %v92
  %599 = vmatpush1.msra.mxu0 %v91
  %600 = vmatprep.subr.mxu0 %v96
  %601 = vmatpush1.msra.mxu0 %v95
  %602 = vmatprep.subr.mxu0 %v100
  %603 = vmatpush1.msra.mxu0 %v99
  %604 = vmatprep.subr.mxu0 0.0
  %605 = vmatpush1.msra.mxu0 0.0
  %606 = vmatprep.subr.mxu0 0.0
  %607 = vmatpush1.msra.mxu0 0.0
  %608 = vmatprep.subr.mxu0 0.0
  %609 = vmatpush1.msra.mxu0 0.0
  %610 = vmatprep.subr.mxu0 0.0
  %611 = vmatpush1.msra.mxu0 0.0
  %612 = vmatprep.subr.mxu0 0.0
  %613 = vmatpush1.msra.mxu0 0.0
  %614 = vmatprep.subr.mxu0 0.0
  %615 = vmatpush1.msra.mxu0 0.0
  %616 = vmatprep.subr.mxu0 0.0
  %617 = vmatpush1.msra.mxu0 0.0
  %618 = vmatprep.subr.mxu0 0.0
  %619 = vmatpush1.msra.mxu0 0.0
  %620 = vmatprep.subr.mxu0 0.0
  %621 = vmatpush1.msra.mxu0 0.0
  %622 = vmatprep.subr.mxu0 0.0
  %623 = vmatpush1.msra.mxu0 0.0
  %624 = vmatprep.subr.mxu0 0.0
  %625 = vmatpush1.msra.mxu0 0.0
  %626 = vmatprep.subr.mxu0 0.0
  %627 = vmatpush1.msra.mxu0 0.0
  %628 = vmatprep.subr.mxu0 0.0
  %629 = vmatpush1.msra.mxu0 0.0
  %630 = vmatprep.subr.mxu0 0.0
  %631 = vmatpush1.msra.mxu0 0.0
  %632 = vmatprep.subr.mxu0 0.0
  %633 = vmatpush1.msra.mxu0 0.0
  %634 = vmatprep.subr.mxu0 0.0
  %635 = vmatpush1.msra.mxu0 0.0
  %636 = vmatprep.mubr.f32.mxu0 0.0
  %637 = vmatmul.mubr.f32.gmra.mrb[0].mxu0 %v570
  %v638 = vpop.f32.mrb[0].mxu0
  %v639 = vadd.f32 0.0, %v638
  %v640 = vpop.f32.mrb[0].mxu0
  %v641 = vadd.f32 0.0, %v640
  %642 = vdwg.mxu0
  %643 = vmatprep.subr.mxu0 %v42
  %644 = vmatpush1.msra.mxu0 %v41
  %645 = vmatprep.subr.mxu0 %v46
  %646 = vmatpush1.msra.mxu0 %v45
  %647 = vmatprep.subr.mxu0 %v50
  %648 = vmatpush1.msra.mxu0 %v49
  %649 = vmatprep.subr.mxu0 %v54
  %650 = vmatpush1.msra.mxu0 %v53
  %651 = vmatprep.subr.mxu0 %v58
  %652 = vmatpush1.msra.mxu0 %v57
  %653 = vmatprep.subr.mxu0 %v62
  %654 = vmatpush1.msra.mxu0 %v61
  %655 = vmatprep.subr.mxu0 %v66
  %656 = vmatpush1.msra.mxu0 %v65
  %657 = vmatprep.subr.mxu0 %v70
  %658 = vmatpush1.msra.mxu0 %v69
  %659 = vmatprep.subr.mxu0 %v74
  %660 = vmatpush1.msra.mxu0 %v73
  %661 = vmatprep.subr.mxu0 %v78
  %662 = vmatpush1.msra.mxu0 %v77
  %663 = vmatprep.subr.mxu0 %v82
  %664 = vmatpush1.msra.mxu0 %v81
  %665 = vmatprep.subr.mxu0 %v86
  %666 = vmatpush1.msra.mxu0 %v85
  %667 = vmatprep.subr.mxu0 %v90
  %668 = vmatpush1.msra.mxu0 %v89
  %669 = vmatprep.subr.mxu0 %v94
  %670 = vmatpush1.msra.mxu0 %v93
  %671 = vmatprep.subr.mxu0 %v98
  %672 = vmatpush1.msra.mxu0 %v97
  %673 = vmatprep.subr.mxu0 %v102
  %674 = vmatpush1.msra.mxu0 %v101
  %675 = vmatprep.subr.mxu0 0.0
  %676 = vmatpush1.msra.mxu0 0.0
  %677 = vmatprep.subr.mxu0 0.0
  %678 = vmatpush1.msra.mxu0 0.0
  %679 = vmatprep.subr.mxu0 0.0
  %680 = vmatpush1.msra.mxu0 0.0
  %681 = vmatprep.subr.mxu0 0.0
  %682 = vmatpush1.msra.mxu0 0.0
  %683 = vmatprep.subr.mxu0 0.0
  %684 = vmatpush1.msra.mxu0 0.0
  %685 = vmatprep.subr.mxu0 0.0
  %686 = vmatpush1.msra.mxu0 0.0
  %687 = vmatprep.subr.mxu0 0.0
  %688 = vmatpush1.msra.mxu0 0.0
  %689 = vmatprep.subr.mxu0 0.0
  %690 = vmatpush1.msra.mxu0 0.0
  %691 = vmatprep.subr.mxu0 0.0
  %692 = vmatpush1.msra.mxu0 0.0
  %693 = vmatprep.subr.mxu0 0.0
  %694 = vmatpush1.msra.mxu0 0.0
  %695 = vmatprep.subr.mxu0 0.0
  %696 = vmatpush1.msra.mxu0 0.0
  %697 = vmatprep.subr.mxu0 0.0
  %698 = vmatpush1.msra.mxu0 0.0
  %699 = vmatprep.subr.mxu0 0.0
  %700 = vmatpush1.msra.mxu0 0.0
  %701 = vmatprep.subr.mxu0 0.0
  %702 = vmatpush1.msra.mxu0 0.0
  %703 = vmatprep.subr.mxu0 0.0
  %704 = vmatpush1.msra.mxu0 0.0
  %705 = vmatprep.subr.mxu0 0.0
  %706 = vmatpush1.msra.mxu0 0.0
  %707 = vmatprep.mubr.f32.mxu0 0.0
  %708 = vmatmul.mubr.f32.gmra.mrb[0].mxu0 %v570
  %v709 = vpop.f32.mrb[0].mxu0
  %v710 = vadd.f32 0.0, %v709
  %v711 = vpop.f32.mrb[0].mxu0
  %v712 = vadd.f32 0.0, %v711
  %713 = vdwg.mxu0
  %v714 = vadd.f32 %v248, %v639
  %v715 = vadd.f32 %v250, %v641
  %v716 = vadd.f32 %v361, %v710
  %v717 = vadd.f32 %v363, %v712
  %v718 = vxor.u32 %v714, 2147483648
  %v719 = vmul.f32 %v718, 1.442695
  %v720 = vpow.pop %v719
  %v721 = vadd.f32 %v720, 1.0
  %v722 = vrcp.pop %v721
  %v723 = vmul.f32 1.0, %v722
  %v724 = vxor.u32 %v715, 2147483648
  %v725 = vmul.f32 %v724, 1.442695
  %v726 = vpow.pop %v725
  %v727 = vadd.f32 %v726, 1.0
  %v728 = vrcp.pop %v727
  %v729 = vmul.f32 1.0, %v728
  %v730 = vtanh.pop %v716
  %v731 = vxor.u32 %v717, 2147483648
  %v732 = vmul.f32 %v731, 1.442695
  %v733 = vpow.pop %v732
  %v734 = vadd.f32 %v733, 1.0
  %v735 = vrcp.pop %v734
  %v736 = vmul.f32 1.0, %v735
  %v737 = vmul.f32 %v729, %v568
  %v738 = vmul.f32 %v723, %v730
  %v739 = vadd.f32 %v737, %v738
  %v740 = vtanh.pop %v739
  %v741 = vmul.f32 %v736, %v740
  %v742 = vmax.f32 %v741, 0.0
  %743 = vmatprep.subr.mxu0 %v40
  %744 = vmatpush1.msra.mxu0 %v39
  %745 = vmatprep.subr.mxu0 %v44
  %746 = vmatpush1.msra.mxu0 %v43
  %747 = vmatprep.subr.mxu0 %v48
  %748 = vmatpush1.msra.mxu0 %v47
  %749 = vmatprep.subr.mxu0 %v52
  %750 = vmatpush1.msra.mxu0 %v51
  %751 = vmatprep.subr.mxu0 %v56
  %752 = vmatpush1.msra.mxu0 %v55
  %753 = vmatprep.subr.mxu0 %v60
  %754 = vmatpush1.msra.mxu0 %v59
  %755 = vmatprep.subr.mxu0 %v64
  %756 = vmatpush1.msra.mxu0 %v63
  %757 = vmatprep.subr.mxu0 %v68
  %758 = vmatpush1.msra.mxu0 %v67
  %759 = vmatprep.subr.mxu0 %v72
  %760 = vmatpush1.msra.mxu0 %v71
  %761 = vmatprep.subr.mxu0 %v76
  %762 = vmatpush1.msra.mxu0 %v75
  %763 = vmatprep.subr.mxu0 %v80
  %764 = vmatpush1.msra.mxu0 %v79
  %765 = vmatprep.subr.mxu0 %v84
  %766 = vmatpush1.msra.mxu0 %v83
  %767 = vmatprep.subr.mxu0 %v88
  %768 = vmatpush1.msra.mxu0 %v87
  %769 = vmatprep.subr.mxu0 %v92
  %770 = vmatpush1.msra.mxu0 %v91
  %771 = vmatprep.subr.mxu0 %v96
  %772 = vmatpush1.msra.mxu0 %v95
  %773 = vmatprep.subr.mxu0 %v100
  %774 = vmatpush1.msra.mxu0 %v99
  %775 = vmatprep.subr.mxu0 0.0
  %776 = vmatpush1.msra.mxu0 0.0
  %777 = vmatprep.subr.mxu0 0.0
  %778 = vmatpush1.msra.mxu0 0.0
  %779 = vmatprep.subr.mxu0 0.0
  %780 = vmatpush1.msra.mxu0 0.0
  %781 = vmatprep.subr.mxu0 0.0
  %782 = vmatpush1.msra.mxu0 0.0
  %783 = vmatprep.subr.mxu0 0.0
  %784 = vmatpush1.msra.mxu0 0.0
  %785 = vmatprep.subr.mxu0 0.0
  %786 = vmatpush1.msra.mxu0 0.0
  %787 = vmatprep.subr.mxu0 0.0
  %788 = vmatpush1.msra.mxu0 0.0
  %789 = vmatprep.subr.mxu0 0.0
  %790 = vmatpush1.msra.mxu0 0.0
  %791 = vmatprep.subr.mxu0 0.0
  %792 = vmatpush1.msra.mxu0 0.0
  %793 = vmatprep.subr.mxu0 0.0
  %794 = vmatpush1.msra.mxu0 0.0
  %795 = vmatprep.subr.mxu0 0.0
  %796 = vmatpush1.msra.mxu0 0.0
  %797 = vmatprep.subr.mxu0 0.0
  %798 = vmatpush1.msra.mxu0 0.0
  %799 = vmatprep.subr.mxu0 0.0
  %800 = vmatpush1.msra.mxu0 0.0
  %801 = vmatprep.subr.mxu0 0.0
  %802 = vmatpush1.msra.mxu0 0.0
  %803 = vmatprep.subr.mxu0 0.0
  %804 = vmatpush1.msra.mxu0 0.0
  %805 = vmatprep.subr.mxu0 0.0
  %806 = vmatpush1.msra.mxu0 0.0
  %807 = vmatprep.mubr.f32.mxu0 0.0
  %808 = vmatmul.mubr.f32.gmra.mrb[0].mxu0 %v741
  %v809 = vpop.f32.mrb[0].mxu0
  %v810 = vadd.f32 0.0, %v809
  %v811 = vpop.f32.mrb[0].mxu0
  %v812 = vadd.f32 0.0, %v811
  %813 = vdwg.mxu0
  %814 = vmatprep.subr.mxu0 %v42
  %815 = vmatpush1.msra.mxu0 %v41
  %816 = vmatprep.subr.mxu0 %v46
  %817 = vmatpush1.msra.mxu0 %v45
  %818 = vmatprep.subr.mxu0 %v50
  %819 = vmatpush1.msra.mxu0 %v49
  %820 = vmatprep.subr.mxu0 %v54
  %821 = vmatpush1.msra.mxu0 %v53
  %822 = vmatprep.subr.mxu0 %v58
  %823 = vmatpush1.msra.mxu0 %v57
  %824 = vmatprep.subr.mxu0 %v62
  %825 = vmatpush1.msra.mxu0 %v61
  %826 = vmatprep.subr.mxu0 %v66
  %827 = vmatpush1.msra.mxu0 %v65
  %828 = vmatprep.subr.mxu0 %v70
  %829 = vmatpush1.msra.mxu0 %v69
  %830 = vmatprep.subr.mxu0 %v74
  %831 = vmatpush1.msra.mxu0 %v73
  %832 = vmatprep.subr.mxu0 %v78
  %833 = vmatpush1.msra.mxu0 %v77
  %834 = vmatprep.subr.mxu0 %v82
  %835 = vmatpush1.msra.mxu0 %v81
  %836 = vmatprep.subr.mxu0 %v86
  %837 = vmatpush1.msra.mxu0 %v85
  %838 = vmatprep.subr.mxu0 %v90
  %839 = vmatpush1.msra.mxu0 %v89
  %840 = vmatprep.subr.mxu0 %v94
  %841 = vmatpush1.msra.mxu0 %v93
  %842 = vmatprep.subr.mxu0 %v98
  %843 = vmatpush1.msra.mxu0 %v97
  %844 = vmatprep.subr.mxu0 %v102
  %845 = vmatpush1.msra.mxu0 %v101
  %846 = vmatprep.subr.mxu0 0.0
  %847 = vmatpush1.msra.mxu0 0.0
  %848 = vmatprep.subr.mxu0 0.0
  %849 = vmatpush1.msra.mxu0 0.0
  %850 = vmatprep.subr.mxu0 0.0
  %851 = vmatpush1.msra.mxu0 0.0
  %852 = vmatprep.subr.mxu0 0.0
  %853 = vmatpush1.msra.mxu0 0.0
  %854 = vmatprep.subr.mxu0 0.0
  %855 = vmatpush1.msra.mxu0 0.0
  %856 = vmatprep.subr.mxu0 0.0
  %857 = vmatpush1.msra.mxu0 0.0
  %858 = vmatprep.subr.mxu0 0.0
  %859 = vmatpush1.msra.mxu0 0.0
  %860 = vmatprep.subr.mxu0 0.0
  %861 = vmatpush1.msra.mxu0 0.0
  %862 = vmatprep.subr.mxu0 0.0
  %863 = vmatpush1.msra.mxu0 0.0
  %864 = vmatprep.subr.mxu0 0.0
  %865 = vmatpush1.msra.mxu0 0.0
  %866 = vmatprep.subr.mxu0 0.0
  %867 = vmatpush1.msra.mxu0 0.0
  %868 = vmatprep.subr.mxu0 0.0
  %869 = vmatpush1.msra.mxu0 0.0
  %870 = vmatprep.subr.mxu0 0.0
  %871 = vmatpush1.msra.mxu0 0.0
  %872 = vmatprep.subr.mxu0 0.0
  %873 = vmatpush1.msra.mxu0 0.0
  %874 = vmatprep.subr.mxu0 0.0
  %875 = vmatpush1.msra.mxu0 0.0
  %876 = vmatprep.subr.mxu0 0.0
  %877 = vmatpush1.msra.mxu0 0.0
  %878 = vmatprep.mubr.f32.mxu0 0.0
  %879 = vmatmul.mubr.f32.gmra.mrb[0].mxu0 %v741
  %v880 = vpop.f32.mrb[0].mxu0
  %v881 = vadd.f32 0.0, %v880
  %v882 = vpop.f32.mrb[0].mxu0
  %v883 = vadd.f32 0.0, %v882
  %884 = vdwg.mxu0
  %v885 = vadd.f32 %v254, %v810
  %v886 = vadd.f32 %v256, %v812
  %v887 = vadd.f32 %v367, %v881
  %v888 = vadd.f32 %v369, %v883
  %v889 = vxor.u32 %v885, 2147483648
  %v890 = vmul.f32 %v889, 1.442695
  %v891 = vpow.pop %v890
  %v892 = vadd.f32 %v891, 1.0
  %v893 = vrcp.pop %v892
  %v894 = vmul.f32 1.0, %v893
  %v895 = vxor.u32 %v886, 2147483648
  %v896 = vmul.f32 %v895, 1.442695
  %v897 = vpow.pop %v896
  %v898 = vadd.f32 %v897, 1.0
  %v899 = vrcp.pop %v898
  %v900 = vmul.f32 1.0, %v899
  %v901 = vtanh.pop %v887
  %v902 = vxor.u32 %v888, 2147483648
  %v903 = vmul.f32 %v902, 1.442695
  %v904 = vpow.pop %v903
  %v905 = vadd.f32 %v904, 1.0
  %v906 = vrcp.pop %v905
  %v907 = vmul.f32 1.0, %v906
  %v908 = vmul.f32 %v900, %v739
  %v909 = vmul.f32 %v894, %v901
  %v910 = vadd.f32 %v908, %v909
  %v911 = vtanh.pop %v910
  %v912 = vmul.f32 %v907, %v911
  %v913 = vmax.f32 %v912, 0.0
  %914 = vmatprep.subr.mxu0 %v40
  %915 = vmatpush1.msra.mxu0 %v39
  %916 = vmatprep.subr.mxu0 %v44
  %917 = vmatpush1.msra.mxu0 %v43
  %918 = vmatprep.subr.mxu0 %v48
  %919 = vmatpush1.msra.mxu0 %v47
  %920 = vmatprep.subr.mxu0 %v52
  %921 = vmatpush1.msra.mxu0 %v51
  %922 = vmatprep.subr.mxu0 %v56
  %923 = vmatpush1.msra.mxu0 %v55
  %924 = vmatprep.subr.mxu0 %v60
  %925 = vmatpush1.msra.mxu0 %v59
  %926 = vmatprep.subr.mxu0 %v64
  %927 = vmatpush1.msra.mxu0 %v63
  %928 = vmatprep.subr.mxu0 %v68
  %929 = vmatpush1.msra.mxu0 %v67
  %930 = vmatprep.subr.mxu0 %v72
  %931 = vmatpush1.msra.mxu0 %v71
  %932 = vmatprep.subr.mxu0 %v76
  %933 = vmatpush1.msra.mxu0 %v75
  %934 = vmatprep.subr.mxu0 %v80
  %935 = vmatpush1.msra.mxu0 %v79
  %936 = vmatprep.subr.mxu0 %v84
  %937 = vmatpush1.msra.mxu0 %v83
  %938 = vmatprep.subr.mxu0 %v88
  %939 = vmatpush1.msra.mxu0 %v87
  %940 = vmatprep.subr.mxu0 %v92
  %941 = vmatpush1.msra.mxu0 %v91
  %942 = vmatprep.subr.mxu0 %v96
  %943 = vmatpush1.msra.mxu0 %v95
  %944 = vmatprep.subr.mxu0 %v100
  %945 = vmatpush1.msra.mxu0 %v99
  %946 = vmatprep.subr.mxu0 0.0
  %947 = vmatpush1.msra.mxu0 0.0
  %948 = vmatprep.subr.mxu0 0.0
  %949 = vmatpush1.msra.mxu0 0.0
  %950 = vmatprep.subr.mxu0 0.0
  %951 = vmatpush1.msra.mxu0 0.0
  %952 = vmatprep.subr.mxu0 0.0
  %953 = vmatpush1.msra.mxu0 0.0
  %954 = vmatprep.subr.mxu0 0.0
  %955 = vmatpush1.msra.mxu0 0.0
  %956 = vmatprep.subr.mxu0 0.0
  %957 = vmatpush1.msra.mxu0 0.0
  %958 = vmatprep.subr.mxu0 0.0
  %959 = vmatpush1.msra.mxu0 0.0
  %960 = vmatprep.subr.mxu0 0.0
  %961 = vmatpush1.msra.mxu0 0.0
  %962 = vmatprep.subr.mxu0 0.0
  %963 = vmatpush1.msra.mxu0 0.0
  %964 = vmatprep.subr.mxu0 0.0
  %965 = vmatpush1.msra.mxu0 0.0
  %966 = vmatprep.subr.mxu0 0.0
  %967 = vmatpush1.msra.mxu0 0.0
  %968 = vmatprep.subr.mxu0 0.0
  %969 = vmatpush1.msra.mxu0 0.0
  %970 = vmatprep.subr.mxu0 0.0
  %971 = vmatpush1.msra.mxu0 0.0
  %972 = vmatprep.subr.mxu0 0.0
  %973 = vmatpush1.msra.mxu0 0.0
  %974 = vmatprep.subr.mxu0 0.0
  %975 = vmatpush1.msra.mxu0 0.0
  %976 = vmatprep.subr.mxu0 0.0
  %977 = vmatpush1.msra.mxu0 0.0
  %978 = vmatprep.mubr.f32.mxu0 0.0
  %979 = vmatmul.mubr.f32.gmra.mrb[0].mxu0 %v912
  %v980 = vpop.f32.mrb[0].mxu0
  %v981 = vadd.f32 0.0, %v980
  %v982 = vpop.f32.mrb[0].mxu0
  %v983 = vadd.f32 0.0, %v982
  %984 = vdwg.mxu0
  %985 = vmatprep.subr.mxu0 %v42
  %986 = vmatpush1.msra.mxu0 %v41
  %987 = vmatprep.subr.mxu0 %v46
  %988 = vmatpush1.msra.mxu0 %v45
  %989 = vmatprep.subr.mxu0 %v50
  %990 = vmatpush1.msra.mxu0 %v49
  %991 = vmatprep.subr.mxu0 %v54
  %992 = vmatpush1.msra.mxu0 %v53
  %993 = vmatprep.subr.mxu0 %v58
  %994 = vmatpush1.msra.mxu0 %v57
  %995 = vmatprep.subr.mxu0 %v62
  %996 = vmatpush1.msra.mxu0 %v61
  %997 = vmatprep.subr.mxu0 %v66
  %998 = vmatpush1.msra.mxu0 %v65
  %999 = vmatprep.subr.mxu0 %v70
  %1000 = vmatpush1.msra.mxu0 %v69
  %1001 = vmatprep.subr.mxu0 %v74
  %1002 = vmatpush1.msra.mxu0 %v73
  %1003 = vmatprep.subr.mxu0 %v78
  %1004 = vmatpush1.msra.mxu0 %v77
  %1005 = vmatprep.subr.mxu0 %v82
  %1006 = vmatpush1.msra.mxu0 %v81
  %1007 = vmatprep.subr.mxu0 %v86
  %1008 = vmatpush1.msra.mxu0 %v85
  %1009 = vmatprep.subr.mxu0 %v90
  %1010 = vmatpush1.msra.mxu0 %v89
  %1011 = vmatprep.subr.mxu0 %v94
  %1012 = vmatpush1.msra.mxu0 %v93
  %1013 = vmatprep.subr.mxu0 %v98
  %1014 = vmatpush1.msra.mxu0 %v97
  %1015 = vmatprep.subr.mxu0 %v102
  %1016 = vmatpush1.msra.mxu0 %v101
  %1017 = vmatprep.subr.mxu0 0.0
  %1018 = vmatpush1.msra.mxu0 0.0
  %1019 = vmatprep.subr.mxu0 0.0
  %1020 = vmatpush1.msra.mxu0 0.0
  %1021 = vmatprep.subr.mxu0 0.0
  %1022 = vmatpush1.msra.mxu0 0.0
  %1023 = vmatprep.subr.mxu0 0.0
  %1024 = vmatpush1.msra.mxu0 0.0
  %1025 = vmatprep.subr.mxu0 0.0
  %1026 = vmatpush1.msra.mxu0 0.0
  %1027 = vmatprep.subr.mxu0 0.0
  %1028 = vmatpush1.msra.mxu0 0.0
  %1029 = vmatprep.subr.mxu0 0.0
  %1030 = vmatpush1.msra.mxu0 0.0
  %1031 = vmatprep.subr.mxu0 0.0
  %1032 = vmatpush1.msra.mxu0 0.0
  %1033 = vmatprep.subr.mxu0 0.0
  %1034 = vmatpush1.msra.mxu0 0.0
  %1035 = vmatprep.subr.mxu0 0.0
  %1036 = vmatpush1.msra.mxu0 0.0
  %1037 = vmatprep.subr.mxu0 0.0
  %1038 = vmatpush1.msra.mxu0 0.0
  %1039 = vmatprep.subr.mxu0 0.0
  %1040 = vmatpush1.msra.mxu0 0.0
  %1041 = vmatprep.subr.mxu0 0.0
  %1042 = vmatpush1.msra.mxu0 0.0
  %1043 = vmatprep.subr.mxu0 0.0
  %1044 = vmatpush1.msra.mxu0 0.0
  %1045 = vmatprep.subr.mxu0 0.0
  %1046 = vmatpush1.msra.mxu0 0.0
  %1047 = vmatprep.subr.mxu0 0.0
  %1048 = vmatpush1.msra.mxu0 0.0
  %1049 = vmatprep.mubr.f32.mxu0 0.0
  %1050 = vmatmul.mubr.f32.gmra.mrb[0].mxu0 %v912
  %v1051 = vpop.f32.mrb[0].mxu0
  %v1052 = vadd.f32 0.0, %v1051
  %v1053 = vpop.f32.mrb[0].mxu0
  %v1054 = vadd.f32 0.0, %v1053
  %1055 = vdwg.mxu0
  %v1056 = vadd.f32 %v260, %v981
  %v1057 = vadd.f32 %v262, %v983
  %v1058 = vadd.f32 %v373, %v1052
  %v1059 = vadd.f32 %v375, %v1054
  %v1060 = vxor.u32 %v1056, 2147483648
  %v1061 = vmul.f32 %v1060, 1.442695
  %v1062 = vpow.pop %v1061
  %v1063 = vadd.f32 %v1062, 1.0
  %v1064 = vrcp.pop %v1063
  %v1065 = vmul.f32 1.0, %v1064
  %v1066 = vxor.u32 %v1057, 2147483648
  %v1067 = vmul.f32 %v1066, 1.442695
  %v1068 = vpow.pop %v1067
  %v1069 = vadd.f32 %v1068, 1.0
  %v1070 = vrcp.pop %v1069
  %v1071 = vmul.f32 1.0, %v1070
  %v1072 = vtanh.pop %v1058
  %v1073 = vxor.u32 %v1059, 2147483648
  %v1074 = vmul.f32 %v1073, 1.442695
  %v1075 = vpow.pop %v1074
  %v1076 = vadd.f32 %v1075, 1.0
  %v1077 = vrcp.pop %v1076
  %v1078 = vmul.f32 1.0, %v1077
  %v1079 = vmul.f32 %v1071, %v910
  %v1080 = vmul.f32 %v1065, %v1072
  %v1081 = vadd.f32 %v1079, %v1080
  %v1082 = vtanh.pop %v1081
  %v1083 = vmul.f32 %v1078, %v1082
  %v1084 = vmax.f32 %v1083, 0.0
  %1085 = vmatprep.subr.mxu0 %v40
  %1086 = vmatpush1.msra.mxu0 %v39
  %1087 = vmatprep.subr.mxu0 %v44
  %1088 = vmatpush1.msra.mxu0 %v43
  %1089 = vmatprep.subr.mxu0 %v48
  %1090 = vmatpush1.msra.mxu0 %v47
  %1091 = vmatprep.subr.mxu0 %v52
  %1092 = vmatpush1.msra.mxu0 %v51
  %1093 = vmatprep.subr.mxu0 %v56
  %1094 = vmatpush1.msra.mxu0 %v55
  %1095 = vmatprep.subr.mxu0 %v60
  %1096 = vmatpush1.msra.mxu0 %v59
  %1097 = vmatprep.subr.mxu0 %v64
  %1098 = vmatpush1.msra.mxu0 %v63
  %1099 = vmatprep.subr.mxu0 %v68
  %1100 = vmatpush1.msra.mxu0 %v67
  %1101 = vmatprep.subr.mxu0 %v72
  %1102 = vmatpush1.msra.mxu0 %v71
  %1103 = vmatprep.subr.mxu0 %v76
  %1104 = vmatpush1.msra.mxu0 %v75
  %1105 = vmatprep.subr.mxu0 %v80
  %1106 = vmatpush1.msra.mxu0 %v79
  %1107 = vmatprep.subr.mxu0 %v84
  %1108 = vmatpush1.msra.mxu0 %v83
  %1109 = vmatprep.subr.mxu0 %v88
  %1110 = vmatpush1.msra.mxu0 %v87
  %1111 = vmatprep.subr.mxu0 %v92
  %1112 = vmatpush1.msra.mxu0 %v91
  %1113 = vmatprep.subr.mxu0 %v96
  %1114 = vmatpush1.msra.mxu0 %v95
  %1115 = vmatprep.subr.mxu0 %v100
  %1116 = vmatpush1.msra.mxu0 %v99
  %1117 = vmatprep.subr.mxu0 0.0
  %1118 = vmatpush1.msra.mxu0 0.0
  %1119 = vmatprep.subr.mxu0 0.0
  %1120 = vmatpush1.msra.mxu0 0.0
  %1121 = vmatprep.subr.mxu0 0.0
  %1122 = vmatpush1.msra.mxu0 0.0
  %1123 = vmatprep.subr.mxu0 0.0
  %1124 = vmatpush1.msra.mxu0 0.0
  %1125 = vmatprep.subr.mxu0 0.0
  %1126 = vmatpush1.msra.mxu0 0.0
  %1127 = vmatprep.subr.mxu0 0.0
  %1128 = vmatpush1.msra.mxu0 0.0
  %1129 = vmatprep.subr.mxu0 0.0
  %1130 = vmatpush1.msra.mxu0 0.0
  %1131 = vmatprep.subr.mxu0 0.0
  %1132 = vmatpush1.msra.mxu0 0.0
  %1133 = vmatprep.subr.mxu0 0.0
  %1134 = vmatpush1.msra.mxu0 0.0
  %1135 = vmatprep.subr.mxu0 0.0
  %1136 = vmatpush1.msra.mxu0 0.0
  %1137 = vmatprep.subr.mxu0 0.0
  %1138 = vmatpush1.msra.mxu0 0.0
  %1139 = vmatprep.subr.mxu0 0.0
  %1140 = vmatpush1.msra.mxu0 0.0
  %1141 = vmatprep.subr.mxu0 0.0
  %1142 = vmatpush1.msra.mxu0 0.0
  %1143 = vmatprep.subr.mxu0 0.0
  %1144 = vmatpush1.msra.mxu0 0.0
  %1145 = vmatprep.subr.mxu0 0.0
  %1146 = vmatpush1.msra.mxu0 0.0
  %1147 = vmatprep.subr.mxu0 0.0
  %1148 = vmatpush1.msra.mxu0 0.0
  %1149 = vmatprep.mubr.f32.mxu0 0.0
  %1150 = vmatmul.mubr.f32.gmra.mrb[0].mxu0 %v1083
  %v1151 = vpop.f32.mrb[0].mxu0
  %v1152 = vadd.f32 0.0, %v1151
  %v1153 = vpop.f32.mrb[0].mxu0
  %v1154 = vadd.f32 0.0, %v1153
  %1155 = vdwg.mxu0
  %1156 = vmatprep.subr.mxu0 %v42
  %1157 = vmatpush1.msra.mxu0 %v41
  %1158 = vmatprep.subr.mxu0 %v46
  %1159 = vmatpush1.msra.mxu0 %v45
  %1160 = vmatprep.subr.mxu0 %v50
  %1161 = vmatpush1.msra.mxu0 %v49
  %1162 = vmatprep.subr.mxu0 %v54
  %1163 = vmatpush1.msra.mxu0 %v53
  %1164 = vmatprep.subr.mxu0 %v58
  %1165 = vmatpush1.msra.mxu0 %v57
  %1166 = vmatprep.subr.mxu0 %v62
  %1167 = vmatpush1.msra.mxu0 %v61
  %1168 = vmatprep.subr.mxu0 %v66
  %1169 = vmatpush1.msra.mxu0 %v65
  %1170 = vmatprep.subr.mxu0 %v70
  %1171 = vmatpush1.msra.mxu0 %v69
  %1172 = vmatprep.subr.mxu0 %v74
  %1173 = vmatpush1.msra.mxu0 %v73
  %1174 = vmatprep.subr.mxu0 %v78
  %1175 = vmatpush1.msra.mxu0 %v77
  %1176 = vmatprep.subr.mxu0 %v82
  %1177 = vmatpush1.msra.mxu0 %v81
  %1178 = vmatprep.subr.mxu0 %v86
  %1179 = vmatpush1.msra.mxu0 %v85
  %1180 = vmatprep.subr.mxu0 %v90
  %1181 = vmatpush1.msra.mxu0 %v89
  %1182 = vmatprep.subr.mxu0 %v94
  %1183 = vmatpush1.msra.mxu0 %v93
  %1184 = vmatprep.subr.mxu0 %v98
  %1185 = vmatpush1.msra.mxu0 %v97
  %1186 = vmatprep.subr.mxu0 %v102
  %1187 = vmatpush1.msra.mxu0 %v101
  %1188 = vmatprep.subr.mxu0 0.0
  %1189 = vmatpush1.msra.mxu0 0.0
  %1190 = vmatprep.subr.mxu0 0.0
  %1191 = vmatpush1.msra.mxu0 0.0
  %1192 = vmatprep.subr.mxu0 0.0
  %1193 = vmatpush1.msra.mxu0 0.0
  %1194 = vmatprep.subr.mxu0 0.0
  %1195 = vmatpush1.msra.mxu0 0.0
  %1196 = vmatprep.subr.mxu0 0.0
  %1197 = vmatpush1.msra.mxu0 0.0
  %1198 = vmatprep.subr.mxu0 0.0
  %1199 = vmatpush1.msra.mxu0 0.0
  %1200 = vmatprep.subr.mxu0 0.0
  %1201 = vmatpush1.msra.mxu0 0.0
  %1202 = vmatprep.subr.mxu0 0.0
  %1203 = vmatpush1.msra.mxu0 0.0
  %1204 = vmatprep.subr.mxu0 0.0
  %1205 = vmatpush1.msra.mxu0 0.0
  %1206 = vmatprep.subr.mxu0 0.0
  %1207 = vmatpush1.msra.mxu0 0.0
  %1208 = vmatprep.subr.mxu0 0.0
  %1209 = vmatpush1.msra.mxu0 0.0
  %1210 = vmatprep.subr.mxu0 0.0
  %1211 = vmatpush1.msra.mxu0 0.0
  %1212 = vmatprep.subr.mxu0 0.0
  %1213 = vmatpush1.msra.mxu0 0.0
  %1214 = vmatprep.subr.mxu0 0.0
  %1215 = vmatpush1.msra.mxu0 0.0
  %1216 = vmatprep.subr.mxu0 0.0
  %1217 = vmatpush1.msra.mxu0 0.0
  %1218 = vmatprep.subr.mxu0 0.0
  %1219 = vmatpush1.msra.mxu0 0.0
  %1220 = vmatprep.mubr.f32.mxu0 0.0
  %1221 = vmatmul.mubr.f32.gmra.mrb[0].mxu0 %v1083
  %v1222 = vpop.f32.mrb[0].mxu0
  %v1223 = vadd.f32 0.0, %v1222
  %v1224 = vpop.f32.mrb[0].mxu0
  %v1225 = vadd.f32 0.0, %v1224
  %1226 = vdwg.mxu0
  %v1227 = vadd.f32 %v266, %v1152
  %v1228 = vadd.f32 %v268, %v1154
  %v1229 = vadd.f32 %v379, %v1223
  %v1230 = vadd.f32 %v381, %v1225
  %v1231 = vxor.u32 %v1227, 2147483648
  %v1232 = vmul.f32 %v1231, 1.442695
  %v1233 = vpow.pop %v1232
  %v1234 = vadd.f32 %v1233, 1.0
  %v1235 = vrcp.pop %v1234
  %v1236 = vmul.f32 1.0, %v1235
  %v1237 = vxor.u32 %v1228, 2147483648
  %v1238 = vmul.f32 %v1237, 1.442695
  %v1239 = vpow.pop %v1238
  %v1240 = vadd.f32 %v1239, 1.0
  %v1241 = vrcp.pop %v1240
  %v1242 = vmul.f32 1.0, %v1241
  %v1243 = vtanh.pop %v1229
  %v1244 = vxor.u32 %v1230, 2147483648
  %v1245 = vmul.f32 %v1244, 1.442695
  %v1246 = vpow.pop %v1245
  %v1247 = vadd.f32 %v1246, 1.0
  %v1248 = vrcp.pop %v1247
  %v1249 = vmul.f32 1.0, %v1248
  %v1250 = vmul.f32 %v1242, %v1081
  %v1251 = vmul.f32 %v1236, %v1243
  %v1252 = vadd.f32 %v1250, %v1251
  %v1253 = vtanh.pop %v1252
  %v1254 = vmul.f32 %v1249, %v1253
  %v1255 = vmax.f32 %v1254, 0.0
  %1256 = vmatprep.subr.mxu0 %v40
  %1257 = vmatpush1.msra.mxu0 %v39
  %1258 = vmatprep.subr.mxu0 %v44
  %1259 = vmatpush1.msra.mxu0 %v43
  %1260 = vmatprep.subr.mxu0 %v48
  %1261 = vmatpush1.msra.mxu0 %v47
  %1262 = vmatprep.subr.mxu0 %v52
  %1263 = vmatpush1.msra.mxu0 %v51
  %1264 = vmatprep.subr.mxu0 %v56
  %1265 = vmatpush1.msra.mxu0 %v55
  %1266 = vmatprep.subr.mxu0 %v60
  %1267 = vmatpush1.msra.mxu0 %v59
  %1268 = vmatprep.subr.mxu0 %v64
  %1269 = vmatpush1.msra.mxu0 %v63
  %1270 = vmatprep.subr.mxu0 %v68
  %1271 = vmatpush1.msra.mxu0 %v67
  %1272 = vmatprep.subr.mxu0 %v72
  %1273 = vmatpush1.msra.mxu0 %v71
  %1274 = vmatprep.subr.mxu0 %v76
  %1275 = vmatpush1.msra.mxu0 %v75
  %1276 = vmatprep.subr.mxu0 %v80
  %1277 = vmatpush1.msra.mxu0 %v79
  %1278 = vmatprep.subr.mxu0 %v84
  %1279 = vmatpush1.msra.mxu0 %v83
  %1280 = vmatprep.subr.mxu0 %v88
  %1281 = vmatpush1.msra.mxu0 %v87
  %1282 = vmatprep.subr.mxu0 %v92
  %1283 = vmatpush1.msra.mxu0 %v91
  %1284 = vmatprep.subr.mxu0 %v96
  %1285 = vmatpush1.msra.mxu0 %v95
  %1286 = vmatprep.subr.mxu0 %v100
  %1287 = vmatpush1.msra.mxu0 %v99
  %1288 = vmatprep.subr.mxu0 0.0
  %1289 = vmatpush1.msra.mxu0 0.0
  %1290 = vmatprep.subr.mxu0 0.0
  %1291 = vmatpush1.msra.mxu0 0.0
  %1292 = vmatprep.subr.mxu0 0.0
  %1293 = vmatpush1.msra.mxu0 0.0
  %1294 = vmatprep.subr.mxu0 0.0
  %1295 = vmatpush1.msra.mxu0 0.0
  %1296 = vmatprep.subr.mxu0 0.0
  %1297 = vmatpush1.msra.mxu0 0.0
  %1298 = vmatprep.subr.mxu0 0.0
  %1299 = vmatpush1.msra.mxu0 0.0
  %1300 = vmatprep.subr.mxu0 0.0
  %1301 = vmatpush1.msra.mxu0 0.0
  %1302 = vmatprep.subr.mxu0 0.0
  %1303 = vmatpush1.msra.mxu0 0.0
  %1304 = vmatprep.subr.mxu0 0.0
  %1305 = vmatpush1.msra.mxu0 0.0
  %1306 = vmatprep.subr.mxu0 0.0
  %1307 = vmatpush1.msra.mxu0 0.0
  %1308 = vmatprep.subr.mxu0 0.0
  %1309 = vmatpush1.msra.mxu0 0.0
  %1310 = vmatprep.subr.mxu0 0.0
  %1311 = vmatpush1.msra.mxu0 0.0
  %1312 = vmatprep.subr.mxu0 0.0
  %1313 = vmatpush1.msra.mxu0 0.0
  %1314 = vmatprep.subr.mxu0 0.0
  %1315 = vmatpush1.msra.mxu0 0.0
  %1316 = vmatprep.subr.mxu0 0.0
  %1317 = vmatpush1.msra.mxu0 0.0
  %1318 = vmatprep.subr.mxu0 0.0
  %1319 = vmatpush1.msra.mxu0 0.0
  %1320 = vmatprep.mubr.f32.mxu0 0.0
  %1321 = vmatmul.mubr.f32.gmra.mrb[0].mxu0 %v1254
  %v1322 = vpop.f32.mrb[0].mxu0
  %v1323 = vadd.f32 0.0, %v1322
  %v1324 = vpop.f32.mrb[0].mxu0
  %v1325 = vadd.f32 0.0, %v1324
  %1326 = vdwg.mxu0
  %1327 = vmatprep.subr.mxu0 %v42
  %1328 = vmatpush1.msra.mxu0 %v41
  %1329 = vmatprep.subr.mxu0 %v46
  %1330 = vmatpush1.msra.mxu0 %v45
  %1331 = vmatprep.subr.mxu0 %v50
  %1332 = vmatpush1.msra.mxu0 %v49
  %1333 = vmatprep.subr.mxu0 %v54
  %1334 = vmatpush1.msra.mxu0 %v53
  %1335 = vmatprep.subr.mxu0 %v58
  %1336 = vmatpush1.msra.mxu0 %v57
  %1337 = vmatprep.subr.mxu0 %v62
  %1338 = vmatpush1.msra.mxu0 %v61
  %1339 = vmatprep.subr.mxu0 %v66
  %1340 = vmatpush1.msra.mxu0 %v65
  %1341 = vmatprep.subr.mxu0 %v70
  %1342 = vmatpush1.msra.mxu0 %v69
  %1343 = vmatprep.subr.mxu0 %v74
  %1344 = vmatpush1.msra.mxu0 %v73
  %1345 = vmatprep.subr.mxu0 %v78
  %1346 = vmatpush1.msra.mxu0 %v77
  %1347 = vmatprep.subr.mxu0 %v82
  %1348 = vmatpush1.msra.mxu0 %v81
  %1349 = vmatprep.subr.mxu0 %v86
  %1350 = vmatpush1.msra.mxu0 %v85
  %1351 = vmatprep.subr.mxu0 %v90
  %1352 = vmatpush1.msra.mxu0 %v89
  %1353 = vmatprep.subr.mxu0 %v94
  %1354 = vmatpush1.msra.mxu0 %v93
  %1355 = vmatprep.subr.mxu0 %v98
  %1356 = vmatpush1.msra.mxu0 %v97
  %1357 = vmatprep.subr.mxu0 %v102
  %1358 = vmatpush1.msra.mxu0 %v101
  %1359 = vmatprep.subr.mxu0 0.0
  %1360 = vmatpush1.msra.mxu0 0.0
  %1361 = vmatprep.subr.mxu0 0.0
  %1362 = vmatpush1.msra.mxu0 0.0
  %1363 = vmatprep.subr.mxu0 0.0
  %1364 = vmatpush1.msra.mxu0 0.0
  %1365 = vmatprep.subr.mxu0 0.0
  %1366 = vmatpush1.msra.mxu0 0.0
  %1367 = vmatprep.subr.mxu0 0.0
  %1368 = vmatpush1.msra.mxu0 0.0
  %1369 = vmatprep.subr.mxu0 0.0
  %1370 = vmatpush1.msra.mxu0 0.0
  %1371 = vmatprep.subr.mxu0 0.0
  %1372 = vmatpush1.msra.mxu0 0.0
  %1373 = vmatprep.subr.mxu0 0.0
  %1374 = vmatpush1.msra.mxu0 0.0
  %1375 = vmatprep.subr.mxu0 0.0
  %1376 = vmatpush1.msra.mxu0 0.0
  %1377 = vmatprep.subr.mxu0 0.0
  %1378 = vmatpush1.msra.mxu0 0.0
  %1379 = vmatprep.subr.mxu0 0.0
  %1380 = vmatpush1.msra.mxu0 0.0
  %1381 = vmatprep.subr.mxu0 0.0
  %1382 = vmatpush1.msra.mxu0 0.0
  %1383 = vmatprep.subr.mxu0 0.0
  %1384 = vmatpush1.msra.mxu0 0.0
  %1385 = vmatprep.subr.mxu0 0.0
  %1386 = vmatpush1.msra.mxu0 0.0
  %1387 = vmatprep.subr.mxu0 0.0
  %1388 = vmatpush1.msra.mxu0 0.0
  %1389 = vmatprep.subr.mxu0 0.0
  %1390 = vmatpush1.msra.mxu0 0.0
  %1391 = vmatprep.mubr.f32.mxu0 0.0
  %1392 = vmatmul.mubr.f32.gmra.mrb[0].mxu0 %v1254
  %v1393 = vpop.f32.mrb[0].mxu0
  %v1394 = vadd.f32 0.0, %v1393
  %v1395 = vpop.f32.mrb[0].mxu0
  %v1396 = vadd.f32 0.0, %v1395
  %1397 = vdwg.mxu0
  %v1398 = vadd.f32 %v272, %v1323
  %v1399 = vadd.f32 %v274, %v1325
  %v1400 = vadd.f32 %v385, %v1394
  %v1401 = vadd.f32 %v387, %v1396
  %v1402 = vxor.u32 %v1398, 2147483648
  %v1403 = vmul.f32 %v1402, 1.442695
  %v1404 = vpow.pop %v1403
  %v1405 = vadd.f32 %v1404, 1.0
  %v1406 = vrcp.pop %v1405
  %v1407 = vmul.f32 1.0, %v1406
  %v1408 = vxor.u32 %v1399, 2147483648
  %v1409 = vmul.f32 %v1408, 1.442695
  %v1410 = vpow.pop %v1409
  %v1411 = vadd.f32 %v1410, 1.0
  %v1412 = vrcp.pop %v1411
  %v1413 = vmul.f32 1.0, %v1412
  %v1414 = vtanh.pop %v1400
  %v1415 = vxor.u32 %v1401, 2147483648
  %v1416 = vmul.f32 %v1415, 1.442695
  %v1417 = vpow.pop %v1416
  %v1418 = vadd.f32 %v1417, 1.0
  %v1419 = vrcp.pop %v1418
  %v1420 = vmul.f32 1.0, %v1419
  %v1421 = vmul.f32 %v1413, %v1252
  %v1422 = vmul.f32 %v1407, %v1414
  %v1423 = vadd.f32 %v1421, %v1422
  %v1424 = vtanh.pop %v1423
  %v1425 = vmul.f32 %v1420, %v1424
  %v1426 = vmax.f32 %v1425, 0.0
  %1427 = vmatprep.subr.mxu0 %v40
  %1428 = vmatpush1.msra.mxu0 %v39
  %1429 = vmatprep.subr.mxu0 %v44
  %1430 = vmatpush1.msra.mxu0 %v43
  %1431 = vmatprep.subr.mxu0 %v48
  %1432 = vmatpush1.msra.mxu0 %v47
  %1433 = vmatprep.subr.mxu0 %v52
  %1434 = vmatpush1.msra.mxu0 %v51
  %1435 = vmatprep.subr.mxu0 %v56
  %1436 = vmatpush1.msra.mxu0 %v55
  %1437 = vmatprep.subr.mxu0 %v60
  %1438 = vmatpush1.msra.mxu0 %v59
  %1439 = vmatprep.subr.mxu0 %v64
  %1440 = vmatpush1.msra.mxu0 %v63
  %1441 = vmatprep.subr.mxu0 %v68
  %1442 = vmatpush1.msra.mxu0 %v67
  %1443 = vmatprep.subr.mxu0 %v72
  %1444 = vmatpush1.msra.mxu0 %v71
  %1445 = vmatprep.subr.mxu0 %v76
  %1446 = vmatpush1.msra.mxu0 %v75
  %1447 = vmatprep.subr.mxu0 %v80
  %1448 = vmatpush1.msra.mxu0 %v79
  %1449 = vmatprep.subr.mxu0 %v84
  %1450 = vmatpush1.msra.mxu0 %v83
  %1451 = vmatprep.subr.mxu0 %v88
  %1452 = vmatpush1.msra.mxu0 %v87
  %1453 = vmatprep.subr.mxu0 %v92
  %1454 = vmatpush1.msra.mxu0 %v91
  %1455 = vmatprep.subr.mxu0 %v96
  %1456 = vmatpush1.msra.mxu0 %v95
  %1457 = vmatprep.subr.mxu0 %v100
  %1458 = vmatpush1.msra.mxu0 %v99
  %1459 = vmatprep.subr.mxu0 0.0
  %1460 = vmatpush1.msra.mxu0 0.0
  %1461 = vmatprep.subr.mxu0 0.0
  %1462 = vmatpush1.msra.mxu0 0.0
  %1463 = vmatprep.subr.mxu0 0.0
  %1464 = vmatpush1.msra.mxu0 0.0
  %1465 = vmatprep.subr.mxu0 0.0
  %1466 = vmatpush1.msra.mxu0 0.0
  %1467 = vmatprep.subr.mxu0 0.0
  %1468 = vmatpush1.msra.mxu0 0.0
  %1469 = vmatprep.subr.mxu0 0.0
  %1470 = vmatpush1.msra.mxu0 0.0
  %1471 = vmatprep.subr.mxu0 0.0
  %1472 = vmatpush1.msra.mxu0 0.0
  %1473 = vmatprep.subr.mxu0 0.0
  %1474 = vmatpush1.msra.mxu0 0.0
  %1475 = vmatprep.subr.mxu0 0.0
  %1476 = vmatpush1.msra.mxu0 0.0
  %1477 = vmatprep.subr.mxu0 0.0
  %1478 = vmatpush1.msra.mxu0 0.0
  %1479 = vmatprep.subr.mxu0 0.0
  %1480 = vmatpush1.msra.mxu0 0.0
  %1481 = vmatprep.subr.mxu0 0.0
  %1482 = vmatpush1.msra.mxu0 0.0
  %1483 = vmatprep.subr.mxu0 0.0
  %1484 = vmatpush1.msra.mxu0 0.0
  %1485 = vmatprep.subr.mxu0 0.0
  %1486 = vmatpush1.msra.mxu0 0.0
  %1487 = vmatprep.subr.mxu0 0.0
  %1488 = vmatpush1.msra.mxu0 0.0
  %1489 = vmatprep.subr.mxu0 0.0
  %1490 = vmatpush1.msra.mxu0 0.0
  %1491 = vmatprep.mubr.f32.mxu0 0.0
  %1492 = vmatmul.mubr.f32.gmra.mrb[0].mxu0 %v1425
  %v1493 = vpop.f32.mrb[0].mxu0
  %v1494 = vadd.f32 0.0, %v1493
  %v1495 = vpop.f32.mrb[0].mxu0
  %v1496 = vadd.f32 0.0, %v1495
  %1497 = vdwg.mxu0
  %1498 = vmatprep.subr.mxu0 %v42
  %1499 = vmatpush1.msra.mxu0 %v41
  %1500 = vmatprep.subr.mxu0 %v46
  %1501 = vmatpush1.msra.mxu0 %v45
  %1502 = vmatprep.subr.mxu0 %v50
  %1503 = vmatpush1.msra.mxu0 %v49
  %1504 = vmatprep.subr.mxu0 %v54
  %1505 = vmatpush1.msra.mxu0 %v53
  %1506 = vmatprep.subr.mxu0 %v58
  %1507 = vmatpush1.msra.mxu0 %v57
  %1508 = vmatprep.subr.mxu0 %v62
  %1509 = vmatpush1.msra.mxu0 %v61
  %1510 = vmatprep.subr.mxu0 %v66
  %1511 = vmatpush1.msra.mxu0 %v65
  %1512 = vmatprep.subr.mxu0 %v70
  %1513 = vmatpush1.msra.mxu0 %v69
  %1514 = vmatprep.subr.mxu0 %v74
  %1515 = vmatpush1.msra.mxu0 %v73
  %1516 = vmatprep.subr.mxu0 %v78
  %1517 = vmatpush1.msra.mxu0 %v77
  %1518 = vmatprep.subr.mxu0 %v82
  %1519 = vmatpush1.msra.mxu0 %v81
  %1520 = vmatprep.subr.mxu0 %v86
  %1521 = vmatpush1.msra.mxu0 %v85
  %1522 = vmatprep.subr.mxu0 %v90
  %1523 = vmatpush1.msra.mxu0 %v89
  %1524 = vmatprep.subr.mxu0 %v94
  %1525 = vmatpush1.msra.mxu0 %v93
  %1526 = vmatprep.subr.mxu0 %v98
  %1527 = vmatpush1.msra.mxu0 %v97
  %1528 = vmatprep.subr.mxu0 %v102
  %1529 = vmatpush1.msra.mxu0 %v101
  %1530 = vmatprep.subr.mxu0 0.0
  %1531 = vmatpush1.msra.mxu0 0.0
  %1532 = vmatprep.subr.mxu0 0.0
  %1533 = vmatpush1.msra.mxu0 0.0
  %1534 = vmatprep.subr.mxu0 0.0
  %1535 = vmatpush1.msra.mxu0 0.0
  %1536 = vmatprep.subr.mxu0 0.0
  %1537 = vmatpush1.msra.mxu0 0.0
  %1538 = vmatprep.subr.mxu0 0.0
  %1539 = vmatpush1.msra.mxu0 0.0
  %1540 = vmatprep.subr.mxu0 0.0
  %1541 = vmatpush1.msra.mxu0 0.0
  %1542 = vmatprep.subr.mxu0 0.0
  %1543 = vmatpush1.msra.mxu0 0.0
  %1544 = vmatprep.subr.mxu0 0.0
  %1545 = vmatpush1.msra.mxu0 0.0
  %1546 = vmatprep.subr.mxu0 0.0
  %1547 = vmatpush1.msra.mxu0 0.0
  %1548 = vmatprep.subr.mxu0 0.0
  %1549 = vmatpush1.msra.mxu0 0.0
  %1550 = vmatprep.subr.mxu0 0.0
  %1551 = vmatpush1.msra.mxu0 0.0
  %1552 = vmatprep.subr.mxu0 0.0
  %1553 = vmatpush1.msra.mxu0 0.0
  %1554 = vmatprep.subr.mxu0 0.0
  %1555 = vmatpush1.msra.mxu0 0.0
  %1556 = vmatprep.subr.mxu0 0.0
  %1557 = vmatpush1.msra.mxu0 0.0
  %1558 = vmatprep.subr.mxu0 0.0
  %1559 = vmatpush1.msra.mxu0 0.0
  %1560 = vmatprep.subr.mxu0 0.0
  %1561 = vmatpush1.msra.mxu0 0.0
  %1562 = vmatprep.mubr.f32.mxu0 0.0
  %1563 = vmatmul.mubr.f32.gmra.mrb[0].mxu0 %v1425
  %v1564 = vpop.f32.mrb[0].mxu0
  %v1565 = vadd.f32 0.0, %v1564
  %v1566 = vpop.f32.mrb[0].mxu0
  %v1567 = vadd.f32 0.0, %v1566
  %1568 = vdwg.mxu0
  %v1569 = vadd.f32 %v278, %v1494
  %v1570 = vadd.f32 %v280, %v1496
  %v1571 = vadd.f32 %v391, %v1565
  %v1572 = vadd.f32 %v393, %v1567
  %v1573 = vxor.u32 %v1569, 2147483648
  %v1574 = vmul.f32 %v1573, 1.442695
  %v1575 = vpow.pop %v1574
  %v1576 = vadd.f32 %v1575, 1.0
  %v1577 = vrcp.pop %v1576
  %v1578 = vmul.f32 1.0, %v1577
  %v1579 = vxor.u32 %v1570, 2147483648
  %v1580 = vmul.f32 %v1579, 1.442695
  %v1581 = vpow.pop %v1580
  %v1582 = vadd.f32 %v1581, 1.0
  %v1583 = vrcp.pop %v1582
  %v1584 = vmul.f32 1.0, %v1583
  %v1585 = vtanh.pop %v1571
  %v1586 = vxor.u32 %v1572, 2147483648
  %v1587 = vmul.f32 %v1586, 1.442695
  %v1588 = vpow.pop %v1587
  %v1589 = vadd.f32 %v1588, 1.0
  %v1590 = vrcp.pop %v1589
  %v1591 = vmul.f32 1.0, %v1590
  %v1592 = vmul.f32 %v1584, %v1423
  %v1593 = vmul.f32 %v1578, %v1585
  %v1594 = vadd.f32 %v1592, %v1593
  %v1595 = vtanh.pop %v1594
  %v1596 = vmul.f32 %v1591, %v1595
  %v1597 = vmax.f32 %v1596, 0.0
  %1598 = vmatprep.subr.mxu0 %v40
  %1599 = vmatpush1.msra.mxu0 %v39
  %1600 = vmatprep.subr.mxu0 %v44
  %1601 = vmatpush1.msra.mxu0 %v43
  %1602 = vmatprep.subr.mxu0 %v48
  %1603 = vmatpush1.msra.mxu0 %v47
  %1604 = vmatprep.subr.mxu0 %v52
  %1605 = vmatpush1.msra.mxu0 %v51
  %1606 = vmatprep.subr.mxu0 %v56
  %1607 = vmatpush1.msra.mxu0 %v55
  %1608 = vmatprep.subr.mxu0 %v60
  %1609 = vmatpush1.msra.mxu0 %v59
  %1610 = vmatprep.subr.mxu0 %v64
  %1611 = vmatpush1.msra.mxu0 %v63
  %1612 = vmatprep.subr.mxu0 %v68
  %1613 = vmatpush1.msra.mxu0 %v67
  %1614 = vmatprep.subr.mxu0 %v72
  %1615 = vmatpush1.msra.mxu0 %v71
  %1616 = vmatprep.subr.mxu0 %v76
  %1617 = vmatpush1.msra.mxu0 %v75
  %1618 = vmatprep.subr.mxu0 %v80
  %1619 = vmatpush1.msra.mxu0 %v79
  %1620 = vmatprep.subr.mxu0 %v84
  %1621 = vmatpush1.msra.mxu0 %v83
  %1622 = vmatprep.subr.mxu0 %v88
  %1623 = vmatpush1.msra.mxu0 %v87
  %1624 = vmatprep.subr.mxu0 %v92
  %1625 = vmatpush1.msra.mxu0 %v91
  %1626 = vmatprep.subr.mxu0 %v96
  %1627 = vmatpush1.msra.mxu0 %v95
  %1628 = vmatprep.subr.mxu0 %v100
  %1629 = vmatpush1.msra.mxu0 %v99
  %1630 = vmatprep.subr.mxu0 0.0
  %1631 = vmatpush1.msra.mxu0 0.0
  %1632 = vmatprep.subr.mxu0 0.0
  %1633 = vmatpush1.msra.mxu0 0.0
  %1634 = vmatprep.subr.mxu0 0.0
  %1635 = vmatpush1.msra.mxu0 0.0
  %1636 = vmatprep.subr.mxu0 0.0
  %1637 = vmatpush1.msra.mxu0 0.0
  %1638 = vmatprep.subr.mxu0 0.0
  %1639 = vmatpush1.msra.mxu0 0.0
  %1640 = vmatprep.subr.mxu0 0.0
  %1641 = vmatpush1.msra.mxu0 0.0
  %1642 = vmatprep.subr.mxu0 0.0
  %1643 = vmatpush1.msra.mxu0 0.0
  %1644 = vmatprep.subr.mxu0 0.0
  %1645 = vmatpush1.msra.mxu0 0.0
  %1646 = vmatprep.subr.mxu0 0.0
  %1647 = vmatpush1.msra.mxu0 0.0
  %1648 = vmatprep.subr.mxu0 0.0
  %1649 = vmatpush1.msra.mxu0 0.0
  %1650 = vmatprep.subr.mxu0 0.0
  %1651 = vmatpush1.msra.mxu0 0.0
  %1652 = vmatprep.subr.mxu0 0.0
  %1653 = vmatpush1.msra.mxu0 0.0
  %1654 = vmatprep.subr.mxu0 0.0
  %1655 = vmatpush1.msra.mxu0 0.0
  %1656 = vmatprep.subr.mxu0 0.0
  %1657 = vmatpush1.msra.mxu0 0.0
  %1658 = vmatprep.subr.mxu0 0.0
  %1659 = vmatpush1.msra.mxu0 0.0
  %1660 = vmatprep.subr.mxu0 0.0
  %1661 = vmatpush1.msra.mxu0 0.0
  %1662 = vmatprep.mubr.f32.mxu0 0.0
  %1663 = vmatmul.mubr.f32.gmra.mrb[0].mxu0 %v1596
  %v1664 = vpop.f32.mrb[0].mxu0
  %v1665 = vadd.f32 0.0, %v1664
  %v1666 = vpop.f32.mrb[0].mxu0
  %v1667 = vadd.f32 0.0, %v1666
  %1668 = vdwg.mxu0
  %1669 = vmatprep.subr.mxu0 %v42
  %1670 = vmatpush1.msra.mxu0 %v41
  %1671 = vmatprep.subr.mxu0 %v46
  %1672 = vmatpush1.msra.mxu0 %v45
  %1673 = vmatprep.subr.mxu0 %v50
  %1674 = vmatpush1.msra.mxu0 %v49
  %1675 = vmatprep.subr.mxu0 %v54
  %1676 = vmatpush1.msra.mxu0 %v53
  %1677 = vmatprep.subr.mxu0 %v58
  %1678 = vmatpush1.msra.mxu0 %v57
  %1679 = vmatprep.subr.mxu0 %v62
  %1680 = vmatpush1.msra.mxu0 %v61
  %1681 = vmatprep.subr.mxu0 %v66
  %1682 = vmatpush1.msra.mxu0 %v65
  %1683 = vmatprep.subr.mxu0 %v70
  %1684 = vmatpush1.msra.mxu0 %v69
  %1685 = vmatprep.subr.mxu0 %v74
  %1686 = vmatpush1.msra.mxu0 %v73
  %1687 = vmatprep.subr.mxu0 %v78
  %1688 = vmatpush1.msra.mxu0 %v77
  %1689 = vmatprep.subr.mxu0 %v82
  %1690 = vmatpush1.msra.mxu0 %v81
  %1691 = vmatprep.subr.mxu0 %v86
  %1692 = vmatpush1.msra.mxu0 %v85
  %1693 = vmatprep.subr.mxu0 %v90
  %1694 = vmatpush1.msra.mxu0 %v89
  %1695 = vmatprep.subr.mxu0 %v94
  %1696 = vmatpush1.msra.mxu0 %v93
  %1697 = vmatprep.subr.mxu0 %v98
  %1698 = vmatpush1.msra.mxu0 %v97
  %1699 = vmatprep.subr.mxu0 %v102
  %1700 = vmatpush1.msra.mxu0 %v101
  %1701 = vmatprep.subr.mxu0 0.0
  %1702 = vmatpush1.msra.mxu0 0.0
  %1703 = vmatprep.subr.mxu0 0.0
  %1704 = vmatpush1.msra.mxu0 0.0
  %1705 = vmatprep.subr.mxu0 0.0
  %1706 = vmatpush1.msra.mxu0 0.0
  %1707 = vmatprep.subr.mxu0 0.0
  %1708 = vmatpush1.msra.mxu0 0.0
  %1709 = vmatprep.subr.mxu0 0.0
  %1710 = vmatpush1.msra.mxu0 0.0
  %1711 = vmatprep.subr.mxu0 0.0
  %1712 = vmatpush1.msra.mxu0 0.0
  %1713 = vmatprep.subr.mxu0 0.0
  %1714 = vmatpush1.msra.mxu0 0.0
  %1715 = vmatprep.subr.mxu0 0.0
  %1716 = vmatpush1.msra.mxu0 0.0
  %1717 = vmatprep.subr.mxu0 0.0
  %1718 = vmatpush1.msra.mxu0 0.0
  %1719 = vmatprep.subr.mxu0 0.0
  %1720 = vmatpush1.msra.mxu0 0.0
  %1721 = vmatprep.subr.mxu0 0.0
  %1722 = vmatpush1.msra.mxu0 0.0
  %1723 = vmatprep.subr.mxu0 0.0
  %1724 = vmatpush1.msra.mxu0 0.0
  %1725 = vmatprep.subr.mxu0 0.0
  %1726 = vmatpush1.msra.mxu0 0.0
  %1727 = vmatprep.subr.mxu0 0.0
  %1728 = vmatpush1.msra.mxu0 0.0
  %1729 = vmatprep.subr.mxu0 0.0
  %1730 = vmatpush1.msra.mxu0 0.0
  %1731 = vmatprep.subr.mxu0 0.0
  %1732 = vmatpush1.msra.mxu0 0.0
  %1733 = vmatprep.mubr.f32.mxu0 0.0
  %1734 = vmatmul.mubr.f32.gmra.mrb[0].mxu0 %v1596
  %v1735 = vpop.f32.mrb[0].mxu0
  %v1736 = vadd.f32 0.0, %v1735
  %v1737 = vpop.f32.mrb[0].mxu0
  %v1738 = vadd.f32 0.0, %v1737
  %1739 = vdwg.mxu0
  %v1740 = vadd.f32 %v284, %v1665
  %v1741 = vadd.f32 %v286, %v1667
  %v1742 = vadd.f32 %v397, %v1736
  %v1743 = vadd.f32 %v399, %v1738
  %v1744 = vxor.u32 %v1740, 2147483648
  %v1745 = vmul.f32 %v1744, 1.442695
  %v1746 = vpow.pop %v1745
  %v1747 = vadd.f32 %v1746, 1.0
  %v1748 = vrcp.pop %v1747
  %v1749 = vmul.f32 1.0, %v1748
  %v1750 = vxor.u32 %v1741, 2147483648
  %v1751 = vmul.f32 %v1750, 1.442695
  %v1752 = vpow.pop %v1751
  %v1753 = vadd.f32 %v1752, 1.0
  %v1754 = vrcp.pop %v1753
  %v1755 = vmul.f32 1.0, %v1754
  %v1756 = vtanh.pop %v1742
  %v1757 = vxor.u32 %v1743, 2147483648
  %v1758 = vmul.f32 %v1757, 1.442695
  %v1759 = vpow.pop %v1758
  %v1760 = vadd.f32 %v1759, 1.0
  %v1761 = vrcp.pop %v1760
  %v1762 = vmul.f32 1.0, %v1761
  %v1763 = vmul.f32 %v1755, %v1594
  %v1764 = vmul.f32 %v1749, %v1756
  %v1765 = vadd.f32 %v1763, %v1764
  %v1766 = vtanh.pop %v1765
  %v1767 = vmul.f32 %v1762, %v1766
  %v1768 = vmax.f32 %v1767, 0.0
  %v1770 = vlaneseq
  %v1771 = vshrl.u32 %v1770, 7
  %v1772 = vsub.s32 0, %v1771
  %v1773 = vrot.slane %v120, %v1772
  %1775 = vmatprep.subr.mxu0 0.0
  %1776 = vmatpush1.msra.mxu0 %v104
  %1777 = vmatprep.subr.mxu0 0.0
  %1778 = vmatpush1.msra.mxu0 %v105
  %1779 = vmatprep.subr.mxu0 0.0
  %1780 = vmatpush1.msra.mxu0 %v106
  %1781 = vmatprep.subr.mxu0 0.0
  %1782 = vmatpush1.msra.mxu0 %v107
  %1783 = vmatprep.subr.mxu0 0.0
  %1784 = vmatpush1.msra.mxu0 %v108
  %1785 = vmatprep.subr.mxu0 0.0
  %1786 = vmatpush1.msra.mxu0 %v109
  %1787 = vmatprep.subr.mxu0 0.0
  %1788 = vmatpush1.msra.mxu0 %v110
  %1789 = vmatprep.subr.mxu0 0.0
  %1790 = vmatpush1.msra.mxu0 %v111
  %1791 = vmatprep.subr.mxu0 0.0
  %1792 = vmatpush1.msra.mxu0 %v112
  %1793 = vmatprep.subr.mxu0 0.0
  %1794 = vmatpush1.msra.mxu0 %v113
  %1795 = vmatprep.subr.mxu0 0.0
  %1796 = vmatpush1.msra.mxu0 %v114
  %1797 = vmatprep.subr.mxu0 0.0
  %1798 = vmatpush1.msra.mxu0 %v115
  %1799 = vmatprep.subr.mxu0 0.0
  %1800 = vmatpush1.msra.mxu0 %v116
  %1801 = vmatprep.subr.mxu0 0.0
  %1802 = vmatpush1.msra.mxu0 %v117
  %1803 = vmatprep.subr.mxu0 0.0
  %1804 = vmatpush1.msra.mxu0 %v118
  %1805 = vmatprep.subr.mxu0 0.0
  %1806 = vmatpush1.msra.mxu0 %v119
  %1807 = vmatprep.subr.mxu0 0.0
  %1808 = vmatpush1.msra.mxu0 0.0
  %1809 = vmatprep.subr.mxu0 0.0
  %1810 = vmatpush1.msra.mxu0 0.0
  %1811 = vmatprep.subr.mxu0 0.0
  %1812 = vmatpush1.msra.mxu0 0.0
  %1813 = vmatprep.subr.mxu0 0.0
  %1814 = vmatpush1.msra.mxu0 0.0
  %1815 = vmatprep.subr.mxu0 0.0
  %1816 = vmatpush1.msra.mxu0 0.0
  %1817 = vmatprep.subr.mxu0 0.0
  %1818 = vmatpush1.msra.mxu0 0.0
  %1819 = vmatprep.subr.mxu0 0.0
  %1820 = vmatpush1.msra.mxu0 0.0
  %1821 = vmatprep.subr.mxu0 0.0
  %1822 = vmatpush1.msra.mxu0 0.0
  %1823 = vmatprep.subr.mxu0 0.0
  %1824 = vmatpush1.msra.mxu0 0.0
  %1825 = vmatprep.subr.mxu0 0.0
  %1826 = vmatpush1.msra.mxu0 0.0
  %1827 = vmatprep.subr.mxu0 0.0
  %1828 = vmatpush1.msra.mxu0 0.0
  %1829 = vmatprep.subr.mxu0 0.0
  %1830 = vmatpush1.msra.mxu0 0.0
  %1831 = vmatprep.subr.mxu0 0.0
  %1832 = vmatpush1.msra.mxu0 0.0
  %1833 = vmatprep.subr.mxu0 0.0
  %1834 = vmatpush1.msra.mxu0 0.0
  %1835 = vmatprep.subr.mxu0 0.0
  %1836 = vmatpush1.msra.mxu0 0.0
  %1837 = vmatprep.subr.mxu0 0.0
  %1838 = vmatpush1.msra.mxu0 0.0
  %1839 = vmatprep.mubr.f32.mxu0 0.0
  %1840 = vmatmul.mubr.f32.gmra.mrb[0].mxu0 %v571
  %v1841 = vpop.f32.mrb[0].mxu0
  %v1842 = vadd.f32 %v1773, %v1841
  %v1843 = vpop.f32.mrb[0].mxu0
  %1844 = vmatprep.mubr.f32.mxu0 0.0
  %1845 = vmatmul.mubr.f32.gmra.mrb[0].mxu0 %v742
  %v1846 = vpop.f32.mrb[0].mxu0
  %v1847 = vadd.f32 %v1773, %v1846
  %v1848 = vpop.f32.mrb[0].mxu0
  %1849 = vmatprep.mubr.f32.mxu0 0.0
  %1850 = vmatmul.mubr.f32.gmra.mrb[0].mxu0 %v913
  %v1851 = vpop.f32.mrb[0].mxu0
  %v1852 = vadd.f32 %v1773, %v1851
  %v1853 = vpop.f32.mrb[0].mxu0
  %1854 = vmatprep.mubr.f32.mxu0 0.0
  %1855 = vmatmul.mubr.f32.gmra.mrb[0].mxu0 %v1084
  %v1856 = vpop.f32.mrb[0].mxu0
  %v1857 = vadd.f32 %v1773, %v1856
  %v1858 = vpop.f32.mrb[0].mxu0
  %1859 = vmatprep.mubr.f32.mxu0 0.0
  %1860 = vmatmul.mubr.f32.gmra.mrb[0].mxu0 %v1255
  %v1861 = vpop.f32.mrb[0].mxu0
  %v1862 = vadd.f32 %v1773, %v1861
  %v1863 = vpop.f32.mrb[0].mxu0
  %1864 = vmatprep.mubr.f32.mxu0 0.0
  %1865 = vmatmul.mubr.f32.gmra.mrb[0].mxu0 %v1426
  %v1866 = vpop.f32.mrb[0].mxu0
  %v1867 = vadd.f32 %v1773, %v1866
  %v1868 = vpop.f32.mrb[0].mxu0
  %1869 = vmatprep.mubr.f32.mxu0 0.0
  %1870 = vmatmul.mubr.f32.gmra.mrb[0].mxu0 %v1597
  %v1871 = vpop.f32.mrb[0].mxu0
  %v1872 = vadd.f32 %v1773, %v1871
  %v1873 = vpop.f32.mrb[0].mxu0
  %1874 = vmatprep.mubr.f32.mxu0 0.0
  %1875 = vmatmul.mubr.f32.gmra.mrb[0].mxu0 %v1768
  %v1876 = vpop.f32.mrb[0].mxu0
  %v1877 = vadd.f32 %v1773, %v1876
  %v1878 = vpop.f32.mrb[0].mxu0
  %1879 = vdwg.mxu0
  %v1880 = vmax.f32 %v1842, %v1862
  %v1881 = vmax.f32 %v1847, %v1867
  %v1882 = vmax.f32 %v1852, %v1872
  %v1883 = vmax.f32 %v1857, %v1877
  %v1884 = vmax.f32 %v1880, %v1881
  %v1885 = vmax.f32 %v1882, %v1883
  %v1886 = vmax.f32 %v1884, %v1885
  %v1887 = vsub.f32 %v1842, %v1886
  %v1888 = vsub.f32 %v1847, %v1886
  %v1889 = vsub.f32 %v1852, %v1886
  %v1890 = vsub.f32 %v1857, %v1886
  %v1891 = vsub.f32 %v1862, %v1886
  %v1892 = vsub.f32 %v1867, %v1886
  %v1893 = vsub.f32 %v1872, %v1886
  %v1894 = vsub.f32 %v1877, %v1886
  %v1895 = vmul.f32 %v1887, 1.442695
  %v1896 = vpow.pop %v1895
  %v1897 = vmul.f32 %v1888, 1.442695
  %v1898 = vpow.pop %v1897
  %v1899 = vmul.f32 %v1889, 1.442695
  %v1900 = vpow.pop %v1899
  %v1901 = vmul.f32 %v1890, 1.442695
  %v1902 = vpow.pop %v1901
  %v1903 = vmul.f32 %v1891, 1.442695
  %v1904 = vpow.pop %v1903
  %v1905 = vmul.f32 %v1892, 1.442695
  %v1906 = vpow.pop %v1905
  %v1907 = vmul.f32 %v1893, 1.442695
  %v1908 = vpow.pop %v1907
  %v1909 = vmul.f32 %v1894, 1.442695
  %v1910 = vpow.pop %v1909
  %v1911 = vadd.f32 %v1896, %v1898
  %v1912 = vadd.f32 %v1911, %v1900
  %v1913 = vadd.f32 %v1912, %v1902
  %v1914 = vadd.f32 %v1913, %v1904
  %v1915 = vadd.f32 %v1914, %v1906
  %v1916 = vadd.f32 %v1915, %v1908
  %v1917 = vadd.f32 %v1916, %v1910
  %v1918 = vrcp.pop %v1917
  %v1919 = vmul.f32 %v1896, %v1918
  %v1920 = vmul.f32 %v1898, %v1918
  %v1921 = vmul.f32 %v1900, %v1918
  %v1922 = vmul.f32 %v1902, %v1918
  %v1923 = vmul.f32 %v1904, %v1918
  %v1924 = vmul.f32 %v1906, %v1918
  %v1925 = vmul.f32 %v1908, %v1918
  %v1926 = vmul.f32 %v1910, %v1918
  %1927 = vst [vmem:[%s6] sm:$0xff] %v1919
  %1928 = vst [vmem:[%s6 + $0x8] sm:$0xff] %v1920
  %1929 = vst [vmem:[%s6 + $0x10] sm:$0xff] %v1921
  %1930 = vst [vmem:[%s6 + $0x18] sm:$0xff] %v1922
  %1931 = vst [vmem:[%s6 + $0x20] sm:$0xff] %v1923
  %1932 = vst [vmem:[%s6 + $0x28] sm:$0xff] %v1924
  %1933 = vst [vmem:[%s6 + $0x30] sm:$0xff] %v1925
  %1934 = vst [vmem:[%s6 + $0x38] sm:$0xff] %v1926
  // Predicated region
  $region26: #{dialogue_emotion_forward.1} parent=0 // pred_check
    _
  $region27: #{dialogue_emotion_forward.1} parent=0 // pred_check_branch
    %1936 = sbr.rel (0) target = $region29
  $region28: #{dialogue_emotion_forward.1} parent=0 // pred_region
    _
  $region29: #{dialogue_emotion_forward.1} parent=0 // pred_fallthru
    _
  // Predicated region
  $region30: #{dialogue_emotion_forward.1} parent=0 // pred_check
    _
  $region31: #{dialogue_emotion_forward.1} parent=0 // pred_check_branch
    %1938 = sbr.rel (0) target = $region33
  $region32: #{dialogue_emotion_forward.1} parent=0 // pred_region
    _
  $region33: #{dialogue_emotion_forward.1} parent=0 // pred_fallthru
    _

</llo_original>
